<compile_context>
chip_gen: v5e
topology: v5e:2x2
jax: 0.10.0
libtpu: 0.0.40
codegen_flags: <defaults>
</compile_context>

<pallas_src>
import jax
import jax.numpy as jnp
import numpy as np
from jax import lax
from jax.experimental import pallas as pl
from jax.experimental.pallas import tpu as pltpu

F32 = jnp.float32
BF16 = jnp.bfloat16


def retain_kernel(x_ref, mask_tm_ref,
                  w_emb_ref, wih_ref, whh_ref, bg_ref, bhn_ref,
                  w_af_ref, b_af_ref, w_bf_ref, b_bf_ref,
                  w_out_ref, b_out_ref,
                  logit_ref, alpha_ref, beta_ref,
                  emb_scr, gih_scr, h_scr, bp_scr):
    TB, T = alpha_ref.shape            # batch tile, time steps
    E = w_emb_ref.shape[1]
    H = whh_ref.shape[0]               # combined hidden width Ha + Hb

    # --------- bulk (non-recurrent) matmuls: bf16 operands, f32 accumulation ---
    emb = jnp.dot(x_ref[...], w_emb_ref[...], preferred_element_type=F32)
    emb_bf = emb.astype(BF16)
    emb_scr[...] = emb_bf
    # fused input-to-hidden projection of BOTH GRUs (gate order r|z|n, each gate
    # laid out [alpha-GRU | beta-GRU]); r,z input+hidden biases pre-folded.
    gih_scr[...] = jnp.dot(emb_bf, wih_ref[...],
                           preferred_element_type=F32) + bg_ref[...]

    whh = whh_ref[...]                 # (H, 3H) bf16, per-gate block-diagonal
    bhn = bhn_ref[...]                 # (1, H)  f32
    w_af = w_af_ref[...]               # (1, H)  f32, zero over the beta-GRU half
    b_af = b_af_ref[...]               # (1, 1)  f32

    # --------- recurrence: ONE fused GRU of width H = Ha + Hb ------------------
    # One (TB,H)@(H,3H) MXU push per step (block-diagonal whh) instead of two;
    # alpha_fc (out_features==1) is VPU multiply + lane reduction riding the
    # slack under the serial MXU chain.
    h = jnp.zeros((TB, H), F32)
    denom = jnp.zeros((TB, 1), F32)
    p_cols = []
    for t in range(T):                                   # static unroll (small T)
        lo = t * TB
        gi = gih_scr[pl.ds(lo, TB), :]                                   # (TB, 3H)
        gh = jnp.dot(h.astype(BF16), whh, preferred_element_type=F32)    # (TB, 3H)
        rz = jax.nn.sigmoid(gi[:, :2 * H] + gh[:, :2 * H])
        r, z = rz[:, :H], rz[:, H:]
        n = jnp.tanh(gi[:, 2 * H:] + r * (gh[:, 2 * H:] + bhn))
        h = (1.0 - z) * n + z * h
        h_scr[pl.ds(lo, TB), :] = h.astype(BF16)
        e_t = jnp.sum(h * w_af, axis=-1, keepdims=True) + b_af           # (TB, 1)
        p_t = jnp.exp(e_t) * mask_tm_ref[pl.ds(lo, TB), :]               # masked exp
        p_cols.append(p_t)
        denom = denom + p_t

    denom = jnp.maximum(denom, 1e-6)                    # guard all-masked rows
    inv_denom = pl.reciprocal(denom, approx=True)       # EUP, off the VALU path

    # single lane-dense, batch-major alpha store
    alpha_ref[...] = jnp.concatenate(p_cols, axis=1) * inv_denom

    # --------- beta_fc as one bulk matmul + one bulk lane-dense store ----------
    bp_scr[...] = jnp.dot(h_scr[...], w_bf_ref[...],
                          preferred_element_type=F32) + b_bf_ref[...]
    beta_ref[...] = jnp.tanh(bp_scr[...] * mask_tm_ref[...])             # (T*TB, E)

    # --------- context accumulation + output projection ------------------------
    ctx = jnp.zeros((TB, E), F32)
    for t in range(T):
        lo = t * TB
        a_t = p_cols[t] * inv_denom                                      # (TB, 1)
        beta_t = beta_ref[pl.ds(lo, TB), :]                              # read back
        emb_t = emb_scr[pl.ds(lo, TB), :].astype(F32)
        ctx = ctx + a_t * beta_t * emb_t

    logit_ref[...] = jnp.dot(ctx.astype(BF16), w_out_ref[...],
                             preferred_element_type=F32) + b_out_ref[...]


# ----------------------------------------------------------------------------
# Parameter fusion: both GRUs -> one block-diagonal GRU of width H = Ha + Hb,
# matmul weights pre-cast to bf16 (biases / VPU operands stay f32).
# ----------------------------------------------------------------------------
def prepare_kernel_params(p):
    Ha = p["whh_a"].shape[2]
    Hb = p["whh_b"].shape[2]
    E = p["w_emb_t"].shape[1]

    def gate_cat(a, b):                       # (X, Ha), (X, Hb) -> (X, Ha+Hb)
        return jnp.concatenate([a, b], axis=1)

    def blockdiag(a, b):                      # (Ha,Ha),(Hb,Hb) -> (H, H)
        top = jnp.concatenate([a, jnp.zeros((Ha, Hb), F32)], axis=1)
        bot = jnp.concatenate([jnp.zeros((Hb, Ha), F32), b], axis=1)
        return jnp.concatenate([top, bot], axis=0)

    wih = jnp.concatenate(
        [gate_cat(p["wih_a"][g], p["wih_b"][g]) for g in range(3)], axis=1)   # (E, 3H)
    whh = jnp.concatenate(
        [blockdiag(p["whh_a"][g], p["whh_b"][g]) for g in range(3)], axis=1)  # (H, 3H)

    def bias_g(g, fold_hidden):
        ba = p["bih_a"][g] + (p["bhh_a"][g] if fold_hidden else 0.0)
        bb = p["bih_b"][g] + (p["bhh_b"][g] if fold_hidden else 0.0)
        return gate_cat(ba, bb)

    bg = jnp.concatenate([bias_g(0, True), bias_g(1, True), bias_g(2, False)],
                         axis=1)                                              # (1, 3H)
    bhn = gate_cat(p["bhh_a"][2], p["bhh_b"][2])                              # (1, H)

    w_af = jnp.concatenate([p["w_af_t"].T, jnp.zeros((1, Hb), F32)], axis=1)  # (1, H)
    w_bf = jnp.concatenate([jnp.zeros((Ha, E), F32), p["w_bf_t"]], axis=0)    # (H, E)

    return (p["w_emb_t"].astype(BF16),
            wih.astype(BF16), whh.astype(BF16), bg, bhn,
            w_af, p["b_af"],
            w_bf.astype(BF16), p["b_bf"],
            p["w_out_t"].astype(BF16), p["b_out"])


def retain_forward(params, x, lengths, batch_tile=128):
    """x: (B, T, dim_input) float32, lengths: (B,) int32."""
    B, T, Din = x.shape
    E = params["w_emb_t"].shape[1]
    Ha = params["whh_a"].shape[2]
    Hb = params["whh_b"].shape[2]
    H = Ha + Hb
    dout = params["w_out_t"].shape[1]

    TB = min(B, batch_tile)
    nb = pl.cdiv(B, TB)
    Bp = nb * TB

    xb = x.astype(BF16)
    mask = (jnp.arange(T)[None, :] < lengths[:, None]).astype(F32)        # (B, T)
    if Bp != B:
        xb = jnp.pad(xb, ((0, Bp - B), (0, 0), (0, 0)))
        mask = jnp.pad(mask, ((0, Bp - B), (0, 0)))

    # time-major within each batch tile: tile row t*TB + b  <->  (batch i*TB+b, t)
    x_tm = xb.reshape(nb, TB, T, Din).transpose(0, 2, 1, 3).reshape(nb, T * TB, Din)
    m_tm = mask.reshape(nb, TB, T, 1).transpose(0, 2, 1, 3).reshape(nb, T * TB, 1)

    kargs = prepare_kernel_params(params)

    # per-tile VMEM estimate: resident weights + scratch + double-buffered tile IO
    w_bytes = sum(int(np.prod(a.shape)) * a.dtype.itemsize for a in kargs)
    scr_bytes = T * TB * (E * 2 + 3 * H * 4 + H * 2 + E * 4)
    io_bytes = T * TB * (Din * 2 + 4 + E * 4) + TB * (T + dout) * 4
    est = w_bytes + scr_bytes + 2 * io_bytes
    vmem_cap = 64 * 1024 * 1024                      # conservative (v7x per-TC)
    try:
        vmem_cap = int(pltpu.get_tpu_info().vmem_capacity_bytes)
    except Exception:
        pass
    vmem_limit = int(min(max(2 * est, 32 * 1024 * 1024), int(0.9 * vmem_cap)))

    w_specs = [pl.BlockSpec(a.shape, lambda i: (0, 0)) for a in kargs]
    out_shape = (
        jax.ShapeDtypeStruct((Bp, dout), F32),       # logit
        jax.ShapeDtypeStruct((Bp, T), F32),          # alpha (batch-major, lane-dense)
        jax.ShapeDtypeStruct((nb, T * TB, E), F32),  # beta  (time-major per tile)
    )

    logit, alpha_bt, beta_tiles = pl.pallas_call(
        retain_kernel,
        out_shape=out_shape,
        grid=(nb,),
        in_specs=[pl.BlockSpec((None, T * TB, Din), lambda i: (i, 0, 0)),
                  pl.BlockSpec((None, T * TB, 1), lambda i: (i, 0, 0))] + w_specs,
        out_specs=(pl.BlockSpec((TB, dout), lambda i: (i, 0)),
                   pl.BlockSpec((TB, T), lambda i: (i, 0)),
                   pl.BlockSpec((None, T * TB, E), lambda i: (i, 0, 0))),
        scratch_shapes=[pltpu.VMEM((T * TB, E), BF16),       # embeddings
                        pltpu.VMEM((T * TB, 3 * H), F32),    # fused i2h pre-acts
                        pltpu.VMEM((T * TB, H), BF16),       # combined hidden states
                        pltpu.VMEM((T * TB, E), F32)],       # beta_fc pre-acts
        compiler_params=pltpu.CompilerParams(
            dimension_semantics=("parallel",),
            vmem_limit_bytes=vmem_limit),
    )(x_tm, m_tm, *kargs)

    logit = logit[:B]
    alpha = alpha_bt[:B].reshape(B, T, 1)
    beta = (beta_tiles.reshape(nb, T, TB, E).transpose(0, 2, 1, 3)
            .reshape(Bp, T, E)[:B])
    return logit, alpha, beta


# ----------------------------------------------------------------------------
# Deterministic parameter initialization (mirrors the shapes in RETAIN.__init__)
# ----------------------------------------------------------------------------
def init_params(key, dim_input, dim_emb, dim_alpha, dim_beta, dim_output):
    ks = jax.random.split(key, 12)

    def xavier(k, out_f, in_f, gain=1.0):
        std = gain * (2.0 / (in_f + out_f)) ** 0.5
        return std * jax.random.normal(k, (out_f, in_f), F32)

    def uni(k, shape, bound):
        return jax.random.uniform(k, shape, F32, -bound, bound)

    w_emb = xavier(ks[0], dim_emb, dim_input)                   # Linear(no bias)

    sa = 1.0 / np.sqrt(dim_alpha)
    wih_a = uni(ks[1], (3, dim_alpha, dim_emb), sa)
    whh_a = uni(ks[2], (3, dim_alpha, dim_alpha), sa)
    bih_a = uni(ks[3], (3, 1, dim_alpha), sa)
    bhh_a = uni(ks[4], (3, 1, dim_alpha), sa)

    w_af = xavier(ks[5], 1, dim_alpha)
    b_af = jnp.zeros((1, 1), F32)

    sb = 1.0 / np.sqrt(dim_beta)
    wih_b = uni(ks[6], (3, dim_beta, dim_emb), sb)
    whh_b = uni(ks[7], (3, dim_beta, dim_beta), sb)
    bih_b = uni(ks[8], (3, 1, dim_beta), sb)
    bhh_b = uni(ks[9], (3, 1, dim_beta), sb)

    w_bf = xavier(ks[10], dim_emb, dim_beta, gain=5.0 / 3.0)    # tanh gain
    b_bf = jnp.zeros((1, dim_emb), F32)

    w_out = xavier(ks[11], dim_output, dim_emb)
    b_out = jnp.zeros((1, dim_output), F32)

    # pre-transpose so everything computes `x @ W` directly
    return dict(
        w_emb_t=w_emb.T,                                   # (Din, E)
        wih_a=jnp.transpose(wih_a, (0, 2, 1)),             # (3, E, Ha)
        whh_a=jnp.transpose(whh_a, (0, 2, 1)),             # (3, Ha, Ha)
        bih_a=bih_a, bhh_a=bhh_a,
        w_af_t=w_af.T, b_af=b_af,                          # (Ha, 1), (1, 1)
        wih_b=jnp.transpose(wih_b, (0, 2, 1)),
        whh_b=jnp.transpose(whh_b, (0, 2, 1)),
        bih_b=bih_b, bhh_b=bhh_b,
        w_bf_t=w_bf.T, b_bf=b_bf,                          # (Hb, E), (1, E)
        w_out_t=w_out.T, b_out=b_out,                      # (E, dout), (1, dout)
    )


# ----------------------------------------------------------------------------
# Pure-JAX f32 reference (same math, un-fused weights) for a correctness check
# ----------------------------------------------------------------------------
def retain_reference(params, x, lengths):
    B, T, _ = x.shape
    emb = x @ params["w_emb_t"]                                        # (B, T, E)
    mask = (jnp.arange(T)[None, :] < lengths[:, None]).astype(F32)[:, :, None]

    def run_gru(inp, wih, whh, bih, bhh):
        H = whh.shape[2]

        def step(h, x_t):
            r = jax.nn.sigmoid(x_t @ wih[0] + bih[0] + h @ whh[0] + bhh[0])
            z = jax.nn.sigmoid(x_t @ wih[1] + bih[1] + h @ whh[1] + bhh[1])
            n = jnp.tanh(x_t @ wih[2] + bih[2] + r * (h @ whh[2] + bhh[2]))
            h_new = (1.0 - z) * n + z * h
            return h_new, h_new

        _, out = lax.scan(step, jnp.zeros((B, H), F32),
                          jnp.transpose(inp, (1, 0, 2)))
        return jnp.transpose(out, (1, 0, 2))

    g = run_gru(emb, params["wih_a"], params["whh_a"], params["bih_a"], params["bhh_a"])
    e = g @ params["w_af_t"] + params["b_af"]                          # (B, T, 1)
    ex = jnp.exp(e) * mask
    alpha = ex / jnp.sum(ex, axis=1, keepdims=True)

    h = run_gru(emb, params["wih_b"], params["whh_b"], params["bih_b"], params["bhh_b"])
    beta = jnp.tanh((h @ params["w_bf_t"] + params["b_bf"]) * mask)    # (B, T, E)

    context = jnp.squeeze(jnp.transpose(alpha, (0, 2, 1)) @ (beta * emb), axis=1)
    logit = context @ params["w_out_t"] + params["b_out"]
    return logit, alpha, beta


if __name__ == "__main__":
    B, T = 2, 8
    dim_input, dim_emb, dim_alpha, dim_beta, dim_output = 16, 32, 32, 32, 1

    key = jax.random.PRNGKey(0)
    kx, kp = jax.random.split(key)
    x = jax.random.normal(kx, (B, T, dim_input), F32)
    lengths = jnp.array([8, 5], jnp.int32)   # sorted descending, max == T

    params = init_params(kp, dim_input, dim_emb, dim_alpha, dim_beta, dim_output)

    logit, alpha, beta = retain_forward(params, x, lengths)
    jax.block_until_ready((logit, alpha, beta))

    ref_logit, ref_alpha, ref_beta = retain_reference(params, x, lengths)
    # bf16 MXU operands (f32 accumulation) -> tolerances loosened slightly vs f32
    np.testing.assert_allclose(np.asarray(logit), np.asarray(ref_logit), rtol=2e-2, atol=2e-2)
    np.testing.assert_allclose(np.asarray(alpha), np.asarray(ref_alpha), rtol=2e-2, atol=2e-2)
    np.testing.assert_allclose(np.asarray(beta), np.asarray(ref_beta), rtol=2e-2, atol=2e-2)

    print("KERNEL_OK")
</pallas_src>

<mosaic_0001>
module attributes {stable_mosaic.version = 11 : i64} {
  func.func @retain_kernel(%arg0: i32, %arg1: memref<1x16x16xbf16, #tpu.memory_space<vmem>>, %arg2: memref<1x16x1xf32, #tpu.memory_space<vmem>>, %arg3: memref<16x32xbf16, #tpu.memory_space<vmem>>, %arg4: memref<32x192xbf16, #tpu.memory_space<vmem>>, %arg5: memref<64x192xbf16, #tpu.memory_space<vmem>>, %arg6: memref<1x192xf32, #tpu.memory_space<vmem>>, %arg7: memref<1x64xf32, #tpu.memory_space<vmem>>, %arg8: memref<1x64xf32, #tpu.memory_space<vmem>>, %arg9: memref<1x1xf32, #tpu.memory_space<vmem>>, %arg10: memref<64x32xbf16, #tpu.memory_space<vmem>>, %arg11: memref<1x32xf32, #tpu.memory_space<vmem>>, %arg12: memref<32x1xbf16, #tpu.memory_space<vmem>>, %arg13: memref<1x1xf32, #tpu.memory_space<vmem>>, %arg14: memref<2x1xf32, #tpu.memory_space<vmem>>, %arg15: memref<2x8xf32, #tpu.memory_space<vmem>>, %arg16: memref<1x16x32xf32, #tpu.memory_space<vmem>>, %arg17: memref<16x32xbf16, #tpu.memory_space<vmem>>, %arg18: memref<16x192xf32, #tpu.memory_space<vmem>>, %arg19: memref<16x64xbf16, #tpu.memory_space<vmem>>, %arg20: memref<16x32xf32, #tpu.memory_space<vmem>>) attributes {dimension_semantics = [#tpu.dimension_semantics<parallel>], iteration_bounds = array<i64: 1>, scalar_prefetch = 0 : i64, scratch_operands = 4 : i64, tpu.core_type = #tpu.core_type<tc>, window_params = [{transform_indices = @transform_0, window_bounds = array<i64: 1, 16, 16>}, {transform_indices = @transform_1, window_bounds = array<i64: 1, 16, 1>}, {pipeline_mode = #tpu.pipeline_mode<synchronous>, transform_indices = @transform_2, window_bounds = array<i64: 16, 32>}, {pipeline_mode = #tpu.pipeline_mode<synchronous>, transform_indices = @transform_3, window_bounds = array<i64: 32, 192>}, {pipeline_mode = #tpu.pipeline_mode<synchronous>, transform_indices = @transform_4, window_bounds = array<i64: 64, 192>}, {pipeline_mode = #tpu.pipeline_mode<synchronous>, transform_indices = @transform_5, window_bounds = array<i64: 1, 192>}, {pipeline_mode = #tpu.pipeline_mode<synchronous>, transform_indices = @transform_6, window_bounds = array<i64: 1, 64>}, {pipeline_mode = #tpu.pipeline_mode<synchronous>, transform_indices = @transform_7, window_bounds = array<i64: 1, 64>}, {pipeline_mode = #tpu.pipeline_mode<synchronous>, transform_indices = @transform_8, window_bounds = array<i64: 1, 1>}, {pipeline_mode = #tpu.pipeline_mode<synchronous>, transform_indices = @transform_9, window_bounds = array<i64: 64, 32>}, {pipeline_mode = #tpu.pipeline_mode<synchronous>, transform_indices = @transform_10, window_bounds = array<i64: 1, 32>}, {pipeline_mode = #tpu.pipeline_mode<synchronous>, transform_indices = @transform_11, window_bounds = array<i64: 32, 1>}, {pipeline_mode = #tpu.pipeline_mode<synchronous>, transform_indices = @transform_12, window_bounds = array<i64: 1, 1>}, {transform_indices = @transform_13, window_bounds = array<i64: 2, 1>}, {transform_indices = @transform_14, window_bounds = array<i64: 2, 8>}, {transform_indices = @transform_15, window_bounds = array<i64: 1, 16, 32>}]} {
    %c0 = arith.constant 0 : index
    %c0_0 = arith.constant 0 : index
    %c0_1 = arith.constant 0 : index
    %0 = vector.load %arg1[%c0, %c0_0, %c0_1] : memref<1x16x16xbf16, #tpu.memory_space<vmem>>, vector<1x16x16xbf16>
    %1 = vector.shape_cast %0 : vector<1x16x16xbf16> to vector<16x16xbf16>
    %c0_2 = arith.constant 0 : index
    %c0_3 = arith.constant 0 : index
    %2 = vector.load %arg3[%c0_2, %c0_3] : memref<16x32xbf16, #tpu.memory_space<vmem>>, vector<16x32xbf16>
    %cst = arith.constant dense<0.000000e+00> : vector<16x32xf32>
    %3 = tpu.matmul %1, %2, %cst {dimension_numbers = #tpu.dot_dimension_numbers<[1], [0], [0], [1], [0, 0, 1, 1], [], []>} : vector<16x16xbf16>, vector<16x32xbf16>, vector<16x32xf32> -> vector<16x32xf32>
    %4 = arith.truncf %3 : vector<16x32xf32> to vector<16x32xbf16>
    %c0_4 = arith.constant 0 : index
    %c0_5 = arith.constant 0 : index
    %5 = vector.load %arg17[%c0_4, %c0_5] : memref<16x32xbf16, #tpu.memory_space<vmem>>, vector<16x32xbf16>
    tpu.vector_store %arg17[%c0_4, %c0_5], %4 {strides = array<i32>} : memref<16x32xbf16, #tpu.memory_space<vmem>>, vector<16x32xbf16>,
    %c0_6 = arith.constant 0 : index
    %c0_7 = arith.constant 0 : index
    %6 = vector.load %arg4[%c0_6, %c0_7] : memref<32x192xbf16, #tpu.memory_space<vmem>>, vector<32x192xbf16>
    %cst_8 = arith.constant dense<0.000000e+00> : vector<16x192xf32>
    %7 = tpu.matmul %4, %6, %cst_8 {dimension_numbers = #tpu.dot_dimension_numbers<[1], [0], [0], [1], [0, 0, 1, 1], [], []>} : vector<16x32xbf16>, vector<32x192xbf16>, vector<16x192xf32> -> vector<16x192xf32>
    %c0_9 = arith.constant 0 : index
    %c0_10 = arith.constant 0 : index
    %8 = vector.load %arg6[%c0_9, %c0_10] : memref<1x192xf32, #tpu.memory_space<vmem>>, vector<1x192xf32>
    %9 = vector.broadcast %8 : vector<1x192xf32> to vector<16x192xf32>
    %10 = arith.addf %7, %9 : vector<16x192xf32>
    %c0_11 = arith.constant 0 : index
    %c0_12 = arith.constant 0 : index
    %11 = vector.load %arg18[%c0_11, %c0_12] : memref<16x192xf32, #tpu.memory_space<vmem>>, vector<16x192xf32>
    tpu.vector_store %arg18[%c0_11, %c0_12], %10 {strides = array<i32>} : memref<16x192xf32, #tpu.memory_space<vmem>>, vector<16x192xf32>,
    %c0_13 = arith.constant 0 : index
    %c0_14 = arith.constant 0 : index
    %12 = vector.load %arg5[%c0_13, %c0_14] : memref<64x192xbf16, #tpu.memory_space<vmem>>, vector<64x192xbf16>
    %c0_15 = arith.constant 0 : index
    %c0_16 = arith.constant 0 : index
    %13 = vector.load %arg7[%c0_15, %c0_16] : memref<1x64xf32, #tpu.memory_space<vmem>>, vector<1x64xf32>
    %c0_17 = arith.constant 0 : index
    %c0_18 = arith.constant 0 : index
    %14 = vector.load %arg8[%c0_17, %c0_18] : memref<1x64xf32, #tpu.memory_space<vmem>>, vector<1x64xf32>
    %c0_19 = arith.constant 0 : index
    %c0_20 = arith.constant 0 : index
    %15 = vector.load %arg9[%c0_19, %c0_20] : memref<1x1xf32, #tpu.memory_space<vmem>>, vector<1x1xf32>
    %cst_21 = arith.constant 0.000000e+00 : f32
    %16 = vector.broadcast %cst_21 : f32 to vector<2x64xf32>
    %cst_22 = arith.constant 0.000000e+00 : f32
    %17 = vector.broadcast %cst_22 : f32 to vector<2x1xf32>
    %c0_23 = arith.constant 0 : index
    %c0_24 = arith.constant 0 : index
    %18 = vector.load %arg18[%c0_23, %c0_24] : memref<16x192xf32, #tpu.memory_space<vmem>>, vector<2x192xf32>
    %19 = arith.truncf %16 : vector<2x64xf32> to vector<2x64xbf16>
    %cst_25 = arith.constant dense<0.000000e+00> : vector<2x192xf32>
    %20 = tpu.matmul %19, %12, %cst_25 {dimension_numbers = #tpu.dot_dimension_numbers<[1], [0], [0], [1], [0, 0, 1, 1], [], []>} : vector<2x64xbf16>, vector<64x192xbf16>, vector<2x192xf32> -> vector<2x192xf32>
    %21 = vector.extract_strided_slice %18 {offsets = [0, 0], sizes = [2, 128], strides = [1, 1]} : vector<2x192xf32> to vector<2x128xf32>
    %22 = vector.extract_strided_slice %20 {offsets = [0, 0], sizes = [2, 128], strides = [1, 1]} : vector<2x192xf32> to vector<2x128xf32>
    %23 = arith.addf %21, %22 : vector<2x128xf32>
    %24 = arith.negf %23 : vector<2x128xf32>
    %25 = math.exp %24 : vector<2x128xf32>
    %cst_26 = arith.constant 1.000000e+00 : f32
    %26 = vector.broadcast %cst_26 : f32 to vector<2x128xf32>
    %27 = arith.addf %26, %25 : vector<2x128xf32>
    %28 = arith.divf %26, %27 : vector<2x128xf32>
    %29 = vector.extract_strided_slice %28 {offsets = [0, 0], sizes = [2, 64], strides = [1, 1]} : vector<2x128xf32> to vector<2x64xf32>
    %30 = vector.extract_strided_slice %28 {offsets = [0, 64], sizes = [2, 64], strides = [1, 1]} : vector<2x128xf32> to vector<2x64xf32>
    %31 = vector.extract_strided_slice %18 {offsets = [0, 128], sizes = [2, 64], strides = [1, 1]} : vector<2x192xf32> to vector<2x64xf32>
    %32 = vector.extract_strided_slice %20 {offsets = [0, 128], sizes = [2, 64], strides = [1, 1]} : vector<2x192xf32> to vector<2x64xf32>
    %33 = vector.broadcast %13 : vector<1x64xf32> to vector<2x64xf32>
    %34 = arith.addf %32, %33 : vector<2x64xf32>
    %35 = arith.mulf %29, %34 : vector<2x64xf32>
    %36 = arith.addf %31, %35 : vector<2x64xf32>
    %37 = math.tanh %36 : vector<2x64xf32>
    %cst_27 = arith.constant 1.000000e+00 : f32
    %38 = vector.broadcast %cst_27 : f32 to vector<2x64xf32>
    %39 = arith.subf %38, %30 : vector<2x64xf32>
    %40 = arith.mulf %39, %37 : vector<2x64xf32>
    %41 = arith.mulf %30, %16 : vector<2x64xf32>
    %42 = arith.addf %40, %41 : vector<2x64xf32>
    %43 = arith.truncf %42 : vector<2x64xf32> to vector<2x64xbf16>
    %c0_28 = arith.constant 0 : index
    %c0_29 = arith.constant 0 : index
    %44 = vector.load %arg19[%c0_28, %c0_29] : memref<16x64xbf16, #tpu.memory_space<vmem>>, vector<2x64xbf16>
    tpu.vector_store %arg19[%c0_28, %c0_29], %43 {strides = array<i32>} : memref<16x64xbf16, #tpu.memory_space<vmem>>, vector<2x64xbf16>,
    %45 = vector.broadcast %14 : vector<1x64xf32> to vector<2x64xf32>
    %46 = arith.mulf %42, %45 : vector<2x64xf32>
    %cst_30 = arith.constant dense<0.000000e+00> : vector<2xf32>
    %47 = vector.multi_reduction <add>, %46, %cst_30 [1] : vector<2x64xf32> to vector<2xf32>
    %48 = vector.shape_cast %47 : vector<2xf32> to vector<2x1xf32>
    %49 = vector.broadcast %15 : vector<1x1xf32> to vector<2x1xf32>
    %50 = arith.addf %48, %49 : vector<2x1xf32>
    %51 = math.exp %50 : vector<2x1xf32>
    %c0_31 = arith.constant 0 : index
    %c0_32 = arith.constant 0 : index
    %c0_33 = arith.constant 0 : index
    %52 = vector.load %arg2[%c0_31, %c0_32, %c0_33] : memref<1x16x1xf32, #tpu.memory_space<vmem>>, vector<1x2x1xf32>
    %53 = vector.shape_cast %52 : vector<1x2x1xf32> to vector<2x1xf32>
    %54 = arith.mulf %51, %53 : vector<2x1xf32>
    %55 = arith.addf %17, %54 : vector<2x1xf32>
    %c2 = arith.constant 2 : index
    %c0_34 = arith.constant 0 : index
    %56 = vector.load %arg18[%c2, %c0_34] : memref<16x192xf32, #tpu.memory_space<vmem>>, vector<2x192xf32>
    %57 = arith.truncf %42 : vector<2x64xf32> to vector<2x64xbf16>
    %cst_35 = arith.constant dense<0.000000e+00> : vector<2x192xf32>
    %58 = tpu.matmul %57, %12, %cst_35 {dimension_numbers = #tpu.dot_dimension_numbers<[1], [0], [0], [1], [0, 0, 1, 1], [], []>} : vector<2x64xbf16>, vector<64x192xbf16>, vector<2x192xf32> -> vector<2x192xf32>
    %59 = vector.extract_strided_slice %56 {offsets = [0, 0], sizes = [2, 128], strides = [1, 1]} : vector<2x192xf32> to vector<2x128xf32>
    %60 = vector.extract_strided_slice %58 {offsets = [0, 0], sizes = [2, 128], strides = [1, 1]} : vector<2x192xf32> to vector<2x128xf32>
    %61 = arith.addf %59, %60 : vector<2x128xf32>
    %62 = arith.negf %61 : vector<2x128xf32>
    %63 = math.exp %62 : vector<2x128xf32>
    %cst_36 = arith.constant 1.000000e+00 : f32
    %64 = vector.broadcast %cst_36 : f32 to vector<2x128xf32>
    %65 = arith.addf %64, %63 : vector<2x128xf32>
    %66 = arith.divf %64, %65 : vector<2x128xf32>
    %67 = vector.extract_strided_slice %66 {offsets = [0, 0], sizes = [2, 64], strides = [1, 1]} : vector<2x128xf32> to vector<2x64xf32>
    %68 = vector.extract_strided_slice %66 {offsets = [0, 64], sizes = [2, 64], strides = [1, 1]} : vector<2x128xf32> to vector<2x64xf32>
    %69 = vector.extract_strided_slice %56 {offsets = [0, 128], sizes = [2, 64], strides = [1, 1]} : vector<2x192xf32> to vector<2x64xf32>
    %70 = vector.extract_strided_slice %58 {offsets = [0, 128], sizes = [2, 64], strides = [1, 1]} : vector<2x192xf32> to vector<2x64xf32>
    %71 = vector.broadcast %13 : vector<1x64xf32> to vector<2x64xf32>
    %72 = arith.addf %70, %71 : vector<2x64xf32>
    %73 = arith.mulf %67, %72 : vector<2x64xf32>
    %74 = arith.addf %69, %73 : vector<2x64xf32>
    %75 = math.tanh %74 : vector<2x64xf32>
    %cst_37 = arith.constant 1.000000e+00 : f32
    %76 = vector.broadcast %cst_37 : f32 to vector<2x64xf32>
    %77 = arith.subf %76, %68 : vector<2x64xf32>
    %78 = arith.mulf %77, %75 : vector<2x64xf32>
    %79 = arith.mulf %68, %42 : vector<2x64xf32>
    %80 = arith.addf %78, %79 : vector<2x64xf32>
    %81 = arith.truncf %80 : vector<2x64xf32> to vector<2x64xbf16>
    %c2_38 = arith.constant 2 : index
    %c0_39 = arith.constant 0 : index
    %82 = vector.load %arg19[%c2_38, %c0_39] : memref<16x64xbf16, #tpu.memory_space<vmem>>, vector<2x64xbf16>
    tpu.vector_store %arg19[%c2_38, %c0_39], %81 {strides = array<i32>} : memref<16x64xbf16, #tpu.memory_space<vmem>>, vector<2x64xbf16>,
    %83 = vector.broadcast %14 : vector<1x64xf32> to vector<2x64xf32>
    %84 = arith.mulf %80, %83 : vector<2x64xf32>
    %cst_40 = arith.constant dense<0.000000e+00> : vector<2xf32>
    %85 = vector.multi_reduction <add>, %84, %cst_40 [1] : vector<2x64xf32> to vector<2xf32>
    %86 = vector.shape_cast %85 : vector<2xf32> to vector<2x1xf32>
    %87 = vector.broadcast %15 : vector<1x1xf32> to vector<2x1xf32>
    %88 = arith.addf %86, %87 : vector<2x1xf32>
    %89 = math.exp %88 : vector<2x1xf32>
    %c0_41 = arith.constant 0 : index
    %c2_42 = arith.constant 2 : index
    %c0_43 = arith.constant 0 : index
    %90 = vector.load %arg2[%c0_41, %c2_42, %c0_43] : memref<1x16x1xf32, #tpu.memory_space<vmem>>, vector<1x2x1xf32>
    %91 = vector.shape_cast %90 : vector<1x2x1xf32> to vector<2x1xf32>
    %92 = arith.mulf %89, %91 : vector<2x1xf32>
    %93 = arith.addf %55, %92 : vector<2x1xf32>
    %c4 = arith.constant 4 : index
    %c0_44 = arith.constant 0 : index
    %94 = vector.load %arg18[%c4, %c0_44] : memref<16x192xf32, #tpu.memory_space<vmem>>, vector<2x192xf32>
    %95 = arith.truncf %80 : vector<2x64xf32> to vector<2x64xbf16>
    %cst_45 = arith.constant dense<0.000000e+00> : vector<2x192xf32>
    %96 = tpu.matmul %95, %12, %cst_45 {dimension_numbers = #tpu.dot_dimension_numbers<[1], [0], [0], [1], [0, 0, 1, 1], [], []>} : vector<2x64xbf16>, vector<64x192xbf16>, vector<2x192xf32> -> vector<2x192xf32>
    %97 = vector.extract_strided_slice %94 {offsets = [0, 0], sizes = [2, 128], strides = [1, 1]} : vector<2x192xf32> to vector<2x128xf32>
    %98 = vector.extract_strided_slice %96 {offsets = [0, 0], sizes = [2, 128], strides = [1, 1]} : vector<2x192xf32> to vector<2x128xf32>
    %99 = arith.addf %97, %98 : vector<2x128xf32>
    %100 = arith.negf %99 : vector<2x128xf32>
    %101 = math.exp %100 : vector<2x128xf32>
    %cst_46 = arith.constant 1.000000e+00 : f32
    %102 = vector.broadcast %cst_46 : f32 to vector<2x128xf32>
    %103 = arith.addf %102, %101 : vector<2x128xf32>
    %104 = arith.divf %102, %103 : vector<2x128xf32>
    %105 = vector.extract_strided_slice %104 {offsets = [0, 0], sizes = [2, 64], strides = [1, 1]} : vector<2x128xf32> to vector<2x64xf32>
    %106 = vector.extract_strided_slice %104 {offsets = [0, 64], sizes = [2, 64], strides = [1, 1]} : vector<2x128xf32> to vector<2x64xf32>
    %107 = vector.extract_strided_slice %94 {offsets = [0, 128], sizes = [2, 64], strides = [1, 1]} : vector<2x192xf32> to vector<2x64xf32>
    %108 = vector.extract_strided_slice %96 {offsets = [0, 128], sizes = [2, 64], strides = [1, 1]} : vector<2x192xf32> to vector<2x64xf32>
    %109 = vector.broadcast %13 : vector<1x64xf32> to vector<2x64xf32>
    %110 = arith.addf %108, %109 : vector<2x64xf32>
    %111 = arith.mulf %105, %110 : vector<2x64xf32>
    %112 = arith.addf %107, %111 : vector<2x64xf32>
    %113 = math.tanh %112 : vector<2x64xf32>
    %cst_47 = arith.constant 1.000000e+00 : f32
    %114 = vector.broadcast %cst_47 : f32 to vector<2x64xf32>
    %115 = arith.subf %114, %106 : vector<2x64xf32>
    %116 = arith.mulf %115, %113 : vector<2x64xf32>
    %117 = arith.mulf %106, %80 : vector<2x64xf32>
    %118 = arith.addf %116, %117 : vector<2x64xf32>
    %119 = arith.truncf %118 : vector<2x64xf32> to vector<2x64xbf16>
    %c4_48 = arith.constant 4 : index
    %c0_49 = arith.constant 0 : index
    %120 = vector.load %arg19[%c4_48, %c0_49] : memref<16x64xbf16, #tpu.memory_space<vmem>>, vector<2x64xbf16>
    tpu.vector_store %arg19[%c4_48, %c0_49], %119 {strides = array<i32>} : memref<16x64xbf16, #tpu.memory_space<vmem>>, vector<2x64xbf16>,
    %121 = vector.broadcast %14 : vector<1x64xf32> to vector<2x64xf32>
    %122 = arith.mulf %118, %121 : vector<2x64xf32>
    %cst_50 = arith.constant dense<0.000000e+00> : vector<2xf32>
    %123 = vector.multi_reduction <add>, %122, %cst_50 [1] : vector<2x64xf32> to vector<2xf32>
    %124 = vector.shape_cast %123 : vector<2xf32> to vector<2x1xf32>
    %125 = vector.broadcast %15 : vector<1x1xf32> to vector<2x1xf32>
    %126 = arith.addf %124, %125 : vector<2x1xf32>
    %127 = math.exp %126 : vector<2x1xf32>
    %c0_51 = arith.constant 0 : index
    %c4_52 = arith.constant 4 : index
    %c0_53 = arith.constant 0 : index
    %128 = vector.load %arg2[%c0_51, %c4_52, %c0_53] : memref<1x16x1xf32, #tpu.memory_space<vmem>>, vector<1x2x1xf32>
    %129 = vector.shape_cast %128 : vector<1x2x1xf32> to vector<2x1xf32>
    %130 = arith.mulf %127, %129 : vector<2x1xf32>
    %131 = arith.addf %93, %130 : vector<2x1xf32>
    %c6 = arith.constant 6 : index
    %c0_54 = arith.constant 0 : index
    %132 = vector.load %arg18[%c6, %c0_54] : memref<16x192xf32, #tpu.memory_space<vmem>>, vector<2x192xf32>
    %133 = arith.truncf %118 : vector<2x64xf32> to vector<2x64xbf16>
    %cst_55 = arith.constant dense<0.000000e+00> : vector<2x192xf32>
    %134 = tpu.matmul %133, %12, %cst_55 {dimension_numbers = #tpu.dot_dimension_numbers<[1], [0], [0], [1], [0, 0, 1, 1], [], []>} : vector<2x64xbf16>, vector<64x192xbf16>, vector<2x192xf32> -> vector<2x192xf32>
    %135 = vector.extract_strided_slice %132 {offsets = [0, 0], sizes = [2, 128], strides = [1, 1]} : vector<2x192xf32> to vector<2x128xf32>
    %136 = vector.extract_strided_slice %134 {offsets = [0, 0], sizes = [2, 128], strides = [1, 1]} : vector<2x192xf32> to vector<2x128xf32>
    %137 = arith.addf %135, %136 : vector<2x128xf32>
    %138 = arith.negf %137 : vector<2x128xf32>
    %139 = math.exp %138 : vector<2x128xf32>
    %cst_56 = arith.constant 1.000000e+00 : f32
    %140 = vector.broadcast %cst_56 : f32 to vector<2x128xf32>
    %141 = arith.addf %140, %139 : vector<2x128xf32>
    %142 = arith.divf %140, %141 : vector<2x128xf32>
    %143 = vector.extract_strided_slice %142 {offsets = [0, 0], sizes = [2, 64], strides = [1, 1]} : vector<2x128xf32> to vector<2x64xf32>
    %144 = vector.extract_strided_slice %142 {offsets = [0, 64], sizes = [2, 64], strides = [1, 1]} : vector<2x128xf32> to vector<2x64xf32>
    %145 = vector.extract_strided_slice %132 {offsets = [0, 128], sizes = [2, 64], strides = [1, 1]} : vector<2x192xf32> to vector<2x64xf32>
    %146 = vector.extract_strided_slice %134 {offsets = [0, 128], sizes = [2, 64], strides = [1, 1]} : vector<2x192xf32> to vector<2x64xf32>
    %147 = vector.broadcast %13 : vector<1x64xf32> to vector<2x64xf32>
    %148 = arith.addf %146, %147 : vector<2x64xf32>
    %149 = arith.mulf %143, %148 : vector<2x64xf32>
    %150 = arith.addf %145, %149 : vector<2x64xf32>
    %151 = math.tanh %150 : vector<2x64xf32>
    %cst_57 = arith.constant 1.000000e+00 : f32
    %152 = vector.broadcast %cst_57 : f32 to vector<2x64xf32>
    %153 = arith.subf %152, %144 : vector<2x64xf32>
    %154 = arith.mulf %153, %151 : vector<2x64xf32>
    %155 = arith.mulf %144, %118 : vector<2x64xf32>
    %156 = arith.addf %154, %155 : vector<2x64xf32>
    %157 = arith.truncf %156 : vector<2x64xf32> to vector<2x64xbf16>
    %c6_58 = arith.constant 6 : index
    %c0_59 = arith.constant 0 : index
    %158 = vector.load %arg19[%c6_58, %c0_59] : memref<16x64xbf16, #tpu.memory_space<vmem>>, vector<2x64xbf16>
    tpu.vector_store %arg19[%c6_58, %c0_59], %157 {strides = array<i32>} : memref<16x64xbf16, #tpu.memory_space<vmem>>, vector<2x64xbf16>,
    %159 = vector.broadcast %14 : vector<1x64xf32> to vector<2x64xf32>
    %160 = arith.mulf %156, %159 : vector<2x64xf32>
    %cst_60 = arith.constant dense<0.000000e+00> : vector<2xf32>
    %161 = vector.multi_reduction <add>, %160, %cst_60 [1] : vector<2x64xf32> to vector<2xf32>
    %162 = vector.shape_cast %161 : vector<2xf32> to vector<2x1xf32>
    %163 = vector.broadcast %15 : vector<1x1xf32> to vector<2x1xf32>
    %164 = arith.addf %162, %163 : vector<2x1xf32>
    %165 = math.exp %164 : vector<2x1xf32>
    %c0_61 = arith.constant 0 : index
    %c6_62 = arith.constant 6 : index
    %c0_63 = arith.constant 0 : index
    %166 = vector.load %arg2[%c0_61, %c6_62, %c0_63] : memref<1x16x1xf32, #tpu.memory_space<vmem>>, vector<1x2x1xf32>
    %167 = vector.shape_cast %166 : vector<1x2x1xf32> to vector<2x1xf32>
    %168 = arith.mulf %165, %167 : vector<2x1xf32>
    %169 = arith.addf %131, %168 : vector<2x1xf32>
    %c8 = arith.constant 8 : index
    %c0_64 = arith.constant 0 : index
    %170 = vector.load %arg18[%c8, %c0_64] : memref<16x192xf32, #tpu.memory_space<vmem>>, vector<2x192xf32>
    %171 = arith.truncf %156 : vector<2x64xf32> to vector<2x64xbf16>
    %cst_65 = arith.constant dense<0.000000e+00> : vector<2x192xf32>
    %172 = tpu.matmul %171, %12, %cst_65 {dimension_numbers = #tpu.dot_dimension_numbers<[1], [0], [0], [1], [0, 0, 1, 1], [], []>} : vector<2x64xbf16>, vector<64x192xbf16>, vector<2x192xf32> -> vector<2x192xf32>
    %173 = vector.extract_strided_slice %170 {offsets = [0, 0], sizes = [2, 128], strides = [1, 1]} : vector<2x192xf32> to vector<2x128xf32>
    %174 = vector.extract_strided_slice %172 {offsets = [0, 0], sizes = [2, 128], strides = [1, 1]} : vector<2x192xf32> to vector<2x128xf32>
    %175 = arith.addf %173, %174 : vector<2x128xf32>
    %176 = arith.negf %175 : vector<2x128xf32>
    %177 = math.exp %176 : vector<2x128xf32>
    %cst_66 = arith.constant 1.000000e+00 : f32
    %178 = vector.broadcast %cst_66 : f32 to vector<2x128xf32>
    %179 = arith.addf %178, %177 : vector<2x128xf32>
    %180 = arith.divf %178, %179 : vector<2x128xf32>
    %181 = vector.extract_strided_slice %180 {offsets = [0, 0], sizes = [2, 64], strides = [1, 1]} : vector<2x128xf32> to vector<2x64xf32>
    %182 = vector.extract_strided_slice %180 {offsets = [0, 64], sizes = [2, 64], strides = [1, 1]} : vector<2x128xf32> to vector<2x64xf32>
    %183 = vector.extract_strided_slice %170 {offsets = [0, 128], sizes = [2, 64], strides = [1, 1]} : vector<2x192xf32> to vector<2x64xf32>
    %184 = vector.extract_strided_slice %172 {offsets = [0, 128], sizes = [2, 64], strides = [1, 1]} : vector<2x192xf32> to vector<2x64xf32>
    %185 = vector.broadcast %13 : vector<1x64xf32> to vector<2x64xf32>
    %186 = arith.addf %184, %185 : vector<2x64xf32>
    %187 = arith.mulf %181, %186 : vector<2x64xf32>
    %188 = arith.addf %183, %187 : vector<2x64xf32>
    %189 = math.tanh %188 : vector<2x64xf32>
    %cst_67 = arith.constant 1.000000e+00 : f32
    %190 = vector.broadcast %cst_67 : f32 to vector<2x64xf32>
    %191 = arith.subf %190, %182 : vector<2x64xf32>
    %192 = arith.mulf %191, %189 : vector<2x64xf32>
    %193 = arith.mulf %182, %156 : vector<2x64xf32>
    %194 = arith.addf %192, %193 : vector<2x64xf32>
    %195 = arith.truncf %194 : vector<2x64xf32> to vector<2x64xbf16>
    %c8_68 = arith.constant 8 : index
    %c0_69 = arith.constant 0 : index
    %196 = vector.load %arg19[%c8_68, %c0_69] : memref<16x64xbf16, #tpu.memory_space<vmem>>, vector<2x64xbf16>
    tpu.vector_store %arg19[%c8_68, %c0_69], %195 {strides = array<i32>} : memref<16x64xbf16, #tpu.memory_space<vmem>>, vector<2x64xbf16>,
    %197 = vector.broadcast %14 : vector<1x64xf32> to vector<2x64xf32>
    %198 = arith.mulf %194, %197 : vector<2x64xf32>
    %cst_70 = arith.constant dense<0.000000e+00> : vector<2xf32>
    %199 = vector.multi_reduction <add>, %198, %cst_70 [1] : vector<2x64xf32> to vector<2xf32>
    %200 = vector.shape_cast %199 : vector<2xf32> to vector<2x1xf32>
    %201 = vector.broadcast %15 : vector<1x1xf32> to vector<2x1xf32>
    %202 = arith.addf %200, %201 : vector<2x1xf32>
    %203 = math.exp %202 : vector<2x1xf32>
    %c0_71 = arith.constant 0 : index
    %c8_72 = arith.constant 8 : index
    %c0_73 = arith.constant 0 : index
    %204 = vector.load %arg2[%c0_71, %c8_72, %c0_73] : memref<1x16x1xf32, #tpu.memory_space<vmem>>, vector<1x2x1xf32>
    %205 = vector.shape_cast %204 : vector<1x2x1xf32> to vector<2x1xf32>
    %206 = arith.mulf %203, %205 : vector<2x1xf32>
    %207 = arith.addf %169, %206 : vector<2x1xf32>
    %c10 = arith.constant 10 : index
    %c0_74 = arith.constant 0 : index
    %208 = vector.load %arg18[%c10, %c0_74] : memref<16x192xf32, #tpu.memory_space<vmem>>, vector<2x192xf32>
    %209 = arith.truncf %194 : vector<2x64xf32> to vector<2x64xbf16>
    %cst_75 = arith.constant dense<0.000000e+00> : vector<2x192xf32>
    %210 = tpu.matmul %209, %12, %cst_75 {dimension_numbers = #tpu.dot_dimension_numbers<[1], [0], [0], [1], [0, 0, 1, 1], [], []>} : vector<2x64xbf16>, vector<64x192xbf16>, vector<2x192xf32> -> vector<2x192xf32>
    %211 = vector.extract_strided_slice %208 {offsets = [0, 0], sizes = [2, 128], strides = [1, 1]} : vector<2x192xf32> to vector<2x128xf32>
    %212 = vector.extract_strided_slice %210 {offsets = [0, 0], sizes = [2, 128], strides = [1, 1]} : vector<2x192xf32> to vector<2x128xf32>
    %213 = arith.addf %211, %212 : vector<2x128xf32>
    %214 = arith.negf %213 : vector<2x128xf32>
    %215 = math.exp %214 : vector<2x128xf32>
    %cst_76 = arith.constant 1.000000e+00 : f32
    %216 = vector.broadcast %cst_76 : f32 to vector<2x128xf32>
    %217 = arith.addf %216, %215 : vector<2x128xf32>
    %218 = arith.divf %216, %217 : vector<2x128xf32>
    %219 = vector.extract_strided_slice %218 {offsets = [0, 0], sizes = [2, 64], strides = [1, 1]} : vector<2x128xf32> to vector<2x64xf32>
    %220 = vector.extract_strided_slice %218 {offsets = [0, 64], sizes = [2, 64], strides = [1, 1]} : vector<2x128xf32> to vector<2x64xf32>
    %221 = vector.extract_strided_slice %208 {offsets = [0, 128], sizes = [2, 64], strides = [1, 1]} : vector<2x192xf32> to vector<2x64xf32>
    %222 = vector.extract_strided_slice %210 {offsets = [0, 128], sizes = [2, 64], strides = [1, 1]} : vector<2x192xf32> to vector<2x64xf32>
    %223 = vector.broadcast %13 : vector<1x64xf32> to vector<2x64xf32>
    %224 = arith.addf %222, %223 : vector<2x64xf32>
    %225 = arith.mulf %219, %224 : vector<2x64xf32>
    %226 = arith.addf %221, %225 : vector<2x64xf32>
    %227 = math.tanh %226 : vector<2x64xf32>
    %cst_77 = arith.constant 1.000000e+00 : f32
    %228 = vector.broadcast %cst_77 : f32 to vector<2x64xf32>
    %229 = arith.subf %228, %220 : vector<2x64xf32>
    %230 = arith.mulf %229, %227 : vector<2x64xf32>
    %231 = arith.mulf %220, %194 : vector<2x64xf32>
    %232 = arith.addf %230, %231 : vector<2x64xf32>
    %233 = arith.truncf %232 : vector<2x64xf32> to vector<2x64xbf16>
    %c10_78 = arith.constant 10 : index
    %c0_79 = arith.constant 0 : index
    %234 = vector.load %arg19[%c10_78, %c0_79] : memref<16x64xbf16, #tpu.memory_space<vmem>>, vector<2x64xbf16>
    tpu.vector_store %arg19[%c10_78, %c0_79], %233 {strides = array<i32>} : memref<16x64xbf16, #tpu.memory_space<vmem>>, vector<2x64xbf16>,
    %235 = vector.broadcast %14 : vector<1x64xf32> to vector<2x64xf32>
    %236 = arith.mulf %232, %235 : vector<2x64xf32>
    %cst_80 = arith.constant dense<0.000000e+00> : vector<2xf32>
    %237 = vector.multi_reduction <add>, %236, %cst_80 [1] : vector<2x64xf32> to vector<2xf32>
    %238 = vector.shape_cast %237 : vector<2xf32> to vector<2x1xf32>
    %239 = vector.broadcast %15 : vector<1x1xf32> to vector<2x1xf32>
    %240 = arith.addf %238, %239 : vector<2x1xf32>
    %241 = math.exp %240 : vector<2x1xf32>
    %c0_81 = arith.constant 0 : index
    %c10_82 = arith.constant 10 : index
    %c0_83 = arith.constant 0 : index
    %242 = vector.load %arg2[%c0_81, %c10_82, %c0_83] : memref<1x16x1xf32, #tpu.memory_space<vmem>>, vector<1x2x1xf32>
    %243 = vector.shape_cast %242 : vector<1x2x1xf32> to vector<2x1xf32>
    %244 = arith.mulf %241, %243 : vector<2x1xf32>
    %245 = arith.addf %207, %244 : vector<2x1xf32>
    %c12 = arith.constant 12 : index
    %c0_84 = arith.constant 0 : index
    %246 = vector.load %arg18[%c12, %c0_84] : memref<16x192xf32, #tpu.memory_space<vmem>>, vector<2x192xf32>
    %247 = arith.truncf %232 : vector<2x64xf32> to vector<2x64xbf16>
    %cst_85 = arith.constant dense<0.000000e+00> : vector<2x192xf32>
    %248 = tpu.matmul %247, %12, %cst_85 {dimension_numbers = #tpu.dot_dimension_numbers<[1], [0], [0], [1], [0, 0, 1, 1], [], []>} : vector<2x64xbf16>, vector<64x192xbf16>, vector<2x192xf32> -> vector<2x192xf32>
    %249 = vector.extract_strided_slice %246 {offsets = [0, 0], sizes = [2, 128], strides = [1, 1]} : vector<2x192xf32> to vector<2x128xf32>
    %250 = vector.extract_strided_slice %248 {offsets = [0, 0], sizes = [2, 128], strides = [1, 1]} : vector<2x192xf32> to vector<2x128xf32>
    %251 = arith.addf %249, %250 : vector<2x128xf32>
    %252 = arith.negf %251 : vector<2x128xf32>
    %253 = math.exp %252 : vector<2x128xf32>
    %cst_86 = arith.constant 1.000000e+00 : f32
    %254 = vector.broadcast %cst_86 : f32 to vector<2x128xf32>
    %255 = arith.addf %254, %253 : vector<2x128xf32>
    %256 = arith.divf %254, %255 : vector<2x128xf32>
    %257 = vector.extract_strided_slice %256 {offsets = [0, 0], sizes = [2, 64], strides = [1, 1]} : vector<2x128xf32> to vector<2x64xf32>
    %258 = vector.extract_strided_slice %256 {offsets = [0, 64], sizes = [2, 64], strides = [1, 1]} : vector<2x128xf32> to vector<2x64xf32>
    %259 = vector.extract_strided_slice %246 {offsets = [0, 128], sizes = [2, 64], strides = [1, 1]} : vector<2x192xf32> to vector<2x64xf32>
    %260 = vector.extract_strided_slice %248 {offsets = [0, 128], sizes = [2, 64], strides = [1, 1]} : vector<2x192xf32> to vector<2x64xf32>
    %261 = vector.broadcast %13 : vector<1x64xf32> to vector<2x64xf32>
    %262 = arith.addf %260, %261 : vector<2x64xf32>
    %263 = arith.mulf %257, %262 : vector<2x64xf32>
    %264 = arith.addf %259, %263 : vector<2x64xf32>
    %265 = math.tanh %264 : vector<2x64xf32>
    %cst_87 = arith.constant 1.000000e+00 : f32
    %266 = vector.broadcast %cst_87 : f32 to vector<2x64xf32>
    %267 = arith.subf %266, %258 : vector<2x64xf32>
    %268 = arith.mulf %267, %265 : vector<2x64xf32>
    %269 = arith.mulf %258, %232 : vector<2x64xf32>
    %270 = arith.addf %268, %269 : vector<2x64xf32>
    %271 = arith.truncf %270 : vector<2x64xf32> to vector<2x64xbf16>
    %c12_88 = arith.constant 12 : index
    %c0_89 = arith.constant 0 : index
    %272 = vector.load %arg19[%c12_88, %c0_89] : memref<16x64xbf16, #tpu.memory_space<vmem>>, vector<2x64xbf16>
    tpu.vector_store %arg19[%c12_88, %c0_89], %271 {strides = array<i32>} : memref<16x64xbf16, #tpu.memory_space<vmem>>, vector<2x64xbf16>,
    %273 = vector.broadcast %14 : vector<1x64xf32> to vector<2x64xf32>
    %274 = arith.mulf %270, %273 : vector<2x64xf32>
    %cst_90 = arith.constant dense<0.000000e+00> : vector<2xf32>
    %275 = vector.multi_reduction <add>, %274, %cst_90 [1] : vector<2x64xf32> to vector<2xf32>
    %276 = vector.shape_cast %275 : vector<2xf32> to vector<2x1xf32>
    %277 = vector.broadcast %15 : vector<1x1xf32> to vector<2x1xf32>
    %278 = arith.addf %276, %277 : vector<2x1xf32>
    %279 = math.exp %278 : vector<2x1xf32>
    %c0_91 = arith.constant 0 : index
    %c12_92 = arith.constant 12 : index
    %c0_93 = arith.constant 0 : index
    %280 = vector.load %arg2[%c0_91, %c12_92, %c0_93] : memref<1x16x1xf32, #tpu.memory_space<vmem>>, vector<1x2x1xf32>
    %281 = vector.shape_cast %280 : vector<1x2x1xf32> to vector<2x1xf32>
    %282 = arith.mulf %279, %281 : vector<2x1xf32>
    %283 = arith.addf %245, %282 : vector<2x1xf32>
    %c14 = arith.constant 14 : index
    %c0_94 = arith.constant 0 : index
    %284 = vector.load %arg18[%c14, %c0_94] : memref<16x192xf32, #tpu.memory_space<vmem>>, vector<2x192xf32>
    %285 = arith.truncf %270 : vector<2x64xf32> to vector<2x64xbf16>
    %cst_95 = arith.constant dense<0.000000e+00> : vector<2x192xf32>
    %286 = tpu.matmul %285, %12, %cst_95 {dimension_numbers = #tpu.dot_dimension_numbers<[1], [0], [0], [1], [0, 0, 1, 1], [], []>} : vector<2x64xbf16>, vector<64x192xbf16>, vector<2x192xf32> -> vector<2x192xf32>
    %287 = vector.extract_strided_slice %284 {offsets = [0, 0], sizes = [2, 128], strides = [1, 1]} : vector<2x192xf32> to vector<2x128xf32>
    %288 = vector.extract_strided_slice %286 {offsets = [0, 0], sizes = [2, 128], strides = [1, 1]} : vector<2x192xf32> to vector<2x128xf32>
    %289 = arith.addf %287, %288 : vector<2x128xf32>
    %290 = arith.negf %289 : vector<2x128xf32>
    %291 = math.exp %290 : vector<2x128xf32>
    %cst_96 = arith.constant 1.000000e+00 : f32
    %292 = vector.broadcast %cst_96 : f32 to vector<2x128xf32>
    %293 = arith.addf %292, %291 : vector<2x128xf32>
    %294 = arith.divf %292, %293 : vector<2x128xf32>
    %295 = vector.extract_strided_slice %294 {offsets = [0, 0], sizes = [2, 64], strides = [1, 1]} : vector<2x128xf32> to vector<2x64xf32>
    %296 = vector.extract_strided_slice %294 {offsets = [0, 64], sizes = [2, 64], strides = [1, 1]} : vector<2x128xf32> to vector<2x64xf32>
    %297 = vector.extract_strided_slice %284 {offsets = [0, 128], sizes = [2, 64], strides = [1, 1]} : vector<2x192xf32> to vector<2x64xf32>
    %298 = vector.extract_strided_slice %286 {offsets = [0, 128], sizes = [2, 64], strides = [1, 1]} : vector<2x192xf32> to vector<2x64xf32>
    %299 = vector.broadcast %13 : vector<1x64xf32> to vector<2x64xf32>
    %300 = arith.addf %298, %299 : vector<2x64xf32>
    %301 = arith.mulf %295, %300 : vector<2x64xf32>
    %302 = arith.addf %297, %301 : vector<2x64xf32>
    %303 = math.tanh %302 : vector<2x64xf32>
    %cst_97 = arith.constant 1.000000e+00 : f32
    %304 = vector.broadcast %cst_97 : f32 to vector<2x64xf32>
    %305 = arith.subf %304, %296 : vector<2x64xf32>
    %306 = arith.mulf %305, %303 : vector<2x64xf32>
    %307 = arith.mulf %296, %270 : vector<2x64xf32>
    %308 = arith.addf %306, %307 : vector<2x64xf32>
    %309 = arith.truncf %308 : vector<2x64xf32> to vector<2x64xbf16>
    %c14_98 = arith.constant 14 : index
    %c0_99 = arith.constant 0 : index
    %310 = vector.load %arg19[%c14_98, %c0_99] : memref<16x64xbf16, #tpu.memory_space<vmem>>, vector<2x64xbf16>
    tpu.vector_store %arg19[%c14_98, %c0_99], %309 {strides = array<i32>} : memref<16x64xbf16, #tpu.memory_space<vmem>>, vector<2x64xbf16>,
    %311 = vector.broadcast %14 : vector<1x64xf32> to vector<2x64xf32>
    %312 = arith.mulf %308, %311 : vector<2x64xf32>
    %cst_100 = arith.constant dense<0.000000e+00> : vector<2xf32>
    %313 = vector.multi_reduction <add>, %312, %cst_100 [1] : vector<2x64xf32> to vector<2xf32>
    %314 = vector.shape_cast %313 : vector<2xf32> to vector<2x1xf32>
    %315 = vector.broadcast %15 : vector<1x1xf32> to vector<2x1xf32>
    %316 = arith.addf %314, %315 : vector<2x1xf32>
    %317 = math.exp %316 : vector<2x1xf32>
    %c0_101 = arith.constant 0 : index
    %c14_102 = arith.constant 14 : index
    %c0_103 = arith.constant 0 : index
    %318 = vector.load %arg2[%c0_101, %c14_102, %c0_103] : memref<1x16x1xf32, #tpu.memory_space<vmem>>, vector<1x2x1xf32>
    %319 = vector.shape_cast %318 : vector<1x2x1xf32> to vector<2x1xf32>
    %320 = arith.mulf %317, %319 : vector<2x1xf32>
    %321 = arith.addf %283, %320 : vector<2x1xf32>
    %cst_104 = arith.constant 9.99999997E-7 : f32
    %322 = vector.broadcast %cst_104 : f32 to vector<2x1xf32>
    %323 = arith.maximumf %321, %322 : vector<2x1xf32>
    %324 = tpu.reciprocal %323 {approx = true} : vector<2x1xf32> -> vector<2x1xf32>
    %325 = tpu.concatenate %54, %92, %130, %168, %206, %244, %282, %320 in 1 : vector<2x1xf32>, vector<2x1xf32>, vector<2x1xf32>, vector<2x1xf32>, vector<2x1xf32>, vector<2x1xf32>, vector<2x1xf32>, vector<2x1xf32> -> vector<2x8xf32>
    %326 = vector.broadcast %324 : vector<2x1xf32> to vector<2x8xf32>
    %327 = arith.mulf %325, %326 : vector<2x8xf32>
    %c0_105 = arith.constant 0 : index
    %c0_106 = arith.constant 0 : index
    %328 = vector.load %arg15[%c0_105, %c0_106] : memref<2x8xf32, #tpu.memory_space<vmem>>, vector<2x8xf32>
    tpu.vector_store %arg15[%c0_105, %c0_106], %327 {strides = array<i32>} : memref<2x8xf32, #tpu.memory_space<vmem>>, vector<2x8xf32>,
    %c0_107 = arith.constant 0 : index
    %c0_108 = arith.constant 0 : index
    %329 = vector.load %arg19[%c0_107, %c0_108] : memref<16x64xbf16, #tpu.memory_space<vmem>>, vector<16x64xbf16>
    %c0_109 = arith.constant 0 : index
    %c0_110 = arith.constant 0 : index
    %330 = vector.load %arg10[%c0_109, %c0_110] : memref<64x32xbf16, #tpu.memory_space<vmem>>, vector<64x32xbf16>
    %cst_111 = arith.constant dense<0.000000e+00> : vector<16x32xf32>
    %331 = tpu.matmul %329, %330, %cst_111 {dimension_numbers = #tpu.dot_dimension_numbers<[1], [0], [0], [1], [0, 0, 1, 1], [], []>} : vector<16x64xbf16>, vector<64x32xbf16>, vector<16x32xf32> -> vector<16x32xf32>
    %c0_112 = arith.constant 0 : index
    %c0_113 = arith.constant 0 : index
    %332 = vector.load %arg11[%c0_112, %c0_113] : memref<1x32xf32, #tpu.memory_space<vmem>>, vector<1x32xf32>
    %333 = vector.broadcast %332 : vector<1x32xf32> to vector<16x32xf32>
    %334 = arith.addf %331, %333 : vector<16x32xf32>
    %c0_114 = arith.constant 0 : index
    %c0_115 = arith.constant 0 : index
    %335 = vector.load %arg20[%c0_114, %c0_115] : memref<16x32xf32, #tpu.memory_space<vmem>>, vector<16x32xf32>
    tpu.vector_store %arg20[%c0_114, %c0_115], %334 {strides = array<i32>} : memref<16x32xf32, #tpu.memory_space<vmem>>, vector<16x32xf32>,
    %c0_116 = arith.constant 0 : index
    %c0_117 = arith.constant 0 : index
    %336 = vector.load %arg20[%c0_116, %c0_117] : memref<16x32xf32, #tpu.memory_space<vmem>>, vector<16x32xf32>
    %c0_118 = arith.constant 0 : index
    %c0_119 = arith.constant 0 : index
    %c0_120 = arith.constant 0 : index
    %337 = vector.load %arg2[%c0_118, %c0_119, %c0_120] : memref<1x16x1xf32, #tpu.memory_space<vmem>>, vector<1x16x1xf32>
    %338 = vector.shape_cast %337 : vector<1x16x1xf32> to vector<16x1xf32>
    %339 = vector.broadcast %338 : vector<16x1xf32> to vector<16x32xf32>
    %340 = arith.mulf %336, %339 : vector<16x32xf32>
    %341 = math.tanh %340 : vector<16x32xf32>
    %c0_121 = arith.constant 0 : index
    %c0_122 = arith.constant 0 : index
    %c0_123 = arith.constant 0 : index
    %342 = vector.load %arg16[%c0_121, %c0_122, %c0_123] : memref<1x16x32xf32, #tpu.memory_space<vmem>>, vector<1x16x32xf32>
    %343 = vector.shape_cast %342 : vector<1x16x32xf32> to vector<16x32xf32>
    %344 = vector.shape_cast %341 : vector<16x32xf32> to vector<1x16x32xf32>
    tpu.vector_store %arg16[%c0_121, %c0_122, %c0_123], %344 {strides = array<i32>} : memref<1x16x32xf32, #tpu.memory_space<vmem>>, vector<1x16x32xf32>,
    %cst_124 = arith.constant 0.000000e+00 : f32
    %345 = vector.broadcast %cst_124 : f32 to vector<2x32xf32>
    %346 = arith.mulf %54, %324 : vector<2x1xf32>
    %c0_125 = arith.constant 0 : index
    %c0_126 = arith.constant 0 : index
    %c0_127 = arith.constant 0 : index
    %347 = vector.load %arg16[%c0_125, %c0_126, %c0_127] : memref<1x16x32xf32, #tpu.memory_space<vmem>>, vector<1x2x32xf32>
    %348 = vector.shape_cast %347 : vector<1x2x32xf32> to vector<2x32xf32>
    %c0_128 = arith.constant 0 : index
    %c0_129 = arith.constant 0 : index
    %349 = vector.load %arg17[%c0_128, %c0_129] : memref<16x32xbf16, #tpu.memory_space<vmem>>, vector<2x32xbf16>
    %350 = arith.extf %349 : vector<2x32xbf16> to vector<2x32xf32>
    %351 = vector.broadcast %346 : vector<2x1xf32> to vector<2x32xf32>
    %352 = arith.mulf %351, %348 : vector<2x32xf32>
    %353 = arith.mulf %352, %350 : vector<2x32xf32>
    %354 = arith.addf %345, %353 : vector<2x32xf32>
    %355 = arith.mulf %92, %324 : vector<2x1xf32>
    %c0_130 = arith.constant 0 : index
    %c2_131 = arith.constant 2 : index
    %c0_132 = arith.constant 0 : index
    %356 = vector.load %arg16[%c0_130, %c2_131, %c0_132] : memref<1x16x32xf32, #tpu.memory_space<vmem>>, vector<1x2x32xf32>
    %357 = vector.shape_cast %356 : vector<1x2x32xf32> to vector<2x32xf32>
    %c2_133 = arith.constant 2 : index
    %c0_134 = arith.constant 0 : index
    %358 = vector.load %arg17[%c2_133, %c0_134] : memref<16x32xbf16, #tpu.memory_space<vmem>>, vector<2x32xbf16>
    %359 = arith.extf %358 : vector<2x32xbf16> to vector<2x32xf32>
    %360 = vector.broadcast %355 : vector<2x1xf32> to vector<2x32xf32>
    %361 = arith.mulf %360, %357 : vector<2x32xf32>
    %362 = arith.mulf %361, %359 : vector<2x32xf32>
    %363 = arith.addf %354, %362 : vector<2x32xf32>
    %364 = arith.mulf %130, %324 : vector<2x1xf32>
    %c0_135 = arith.constant 0 : index
    %c4_136 = arith.constant 4 : index
    %c0_137 = arith.constant 0 : index
    %365 = vector.load %arg16[%c0_135, %c4_136, %c0_137] : memref<1x16x32xf32, #tpu.memory_space<vmem>>, vector<1x2x32xf32>
    %366 = vector.shape_cast %365 : vector<1x2x32xf32> to vector<2x32xf32>
    %c4_138 = arith.constant 4 : index
    %c0_139 = arith.constant 0 : index
    %367 = vector.load %arg17[%c4_138, %c0_139] : memref<16x32xbf16, #tpu.memory_space<vmem>>, vector<2x32xbf16>
    %368 = arith.extf %367 : vector<2x32xbf16> to vector<2x32xf32>
    %369 = vector.broadcast %364 : vector<2x1xf32> to vector<2x32xf32>
    %370 = arith.mulf %369, %366 : vector<2x32xf32>
    %371 = arith.mulf %370, %368 : vector<2x32xf32>
    %372 = arith.addf %363, %371 : vector<2x32xf32>
    %373 = arith.mulf %168, %324 : vector<2x1xf32>
    %c0_140 = arith.constant 0 : index
    %c6_141 = arith.constant 6 : index
    %c0_142 = arith.constant 0 : index
    %374 = vector.load %arg16[%c0_140, %c6_141, %c0_142] : memref<1x16x32xf32, #tpu.memory_space<vmem>>, vector<1x2x32xf32>
    %375 = vector.shape_cast %374 : vector<1x2x32xf32> to vector<2x32xf32>
    %c6_143 = arith.constant 6 : index
    %c0_144 = arith.constant 0 : index
    %376 = vector.load %arg17[%c6_143, %c0_144] : memref<16x32xbf16, #tpu.memory_space<vmem>>, vector<2x32xbf16>
    %377 = arith.extf %376 : vector<2x32xbf16> to vector<2x32xf32>
    %378 = vector.broadcast %373 : vector<2x1xf32> to vector<2x32xf32>
    %379 = arith.mulf %378, %375 : vector<2x32xf32>
    %380 = arith.mulf %379, %377 : vector<2x32xf32>
    %381 = arith.addf %372, %380 : vector<2x32xf32>
    %382 = arith.mulf %206, %324 : vector<2x1xf32>
    %c0_145 = arith.constant 0 : index
    %c8_146 = arith.constant 8 : index
    %c0_147 = arith.constant 0 : index
    %383 = vector.load %arg16[%c0_145, %c8_146, %c0_147] : memref<1x16x32xf32, #tpu.memory_space<vmem>>, vector<1x2x32xf32>
    %384 = vector.shape_cast %383 : vector<1x2x32xf32> to vector<2x32xf32>
    %c8_148 = arith.constant 8 : index
    %c0_149 = arith.constant 0 : index
    %385 = vector.load %arg17[%c8_148, %c0_149] : memref<16x32xbf16, #tpu.memory_space<vmem>>, vector<2x32xbf16>
    %386 = arith.extf %385 : vector<2x32xbf16> to vector<2x32xf32>
    %387 = vector.broadcast %382 : vector<2x1xf32> to vector<2x32xf32>
    %388 = arith.mulf %387, %384 : vector<2x32xf32>
    %389 = arith.mulf %388, %386 : vector<2x32xf32>
    %390 = arith.addf %381, %389 : vector<2x32xf32>
    %391 = arith.mulf %244, %324 : vector<2x1xf32>
    %c0_150 = arith.constant 0 : index
    %c10_151 = arith.constant 10 : index
    %c0_152 = arith.constant 0 : index
    %392 = vector.load %arg16[%c0_150, %c10_151, %c0_152] : memref<1x16x32xf32, #tpu.memory_space<vmem>>, vector<1x2x32xf32>
    %393 = vector.shape_cast %392 : vector<1x2x32xf32> to vector<2x32xf32>
    %c10_153 = arith.constant 10 : index
    %c0_154 = arith.constant 0 : index
    %394 = vector.load %arg17[%c10_153, %c0_154] : memref<16x32xbf16, #tpu.memory_space<vmem>>, vector<2x32xbf16>
    %395 = arith.extf %394 : vector<2x32xbf16> to vector<2x32xf32>
    %396 = vector.broadcast %391 : vector<2x1xf32> to vector<2x32xf32>
    %397 = arith.mulf %396, %393 : vector<2x32xf32>
    %398 = arith.mulf %397, %395 : vector<2x32xf32>
    %399 = arith.addf %390, %398 : vector<2x32xf32>
    %400 = arith.mulf %282, %324 : vector<2x1xf32>
    %c0_155 = arith.constant 0 : index
    %c12_156 = arith.constant 12 : index
    %c0_157 = arith.constant 0 : index
    %401 = vector.load %arg16[%c0_155, %c12_156, %c0_157] : memref<1x16x32xf32, #tpu.memory_space<vmem>>, vector<1x2x32xf32>
    %402 = vector.shape_cast %401 : vector<1x2x32xf32> to vector<2x32xf32>
    %c12_158 = arith.constant 12 : index
    %c0_159 = arith.constant 0 : index
    %403 = vector.load %arg17[%c12_158, %c0_159] : memref<16x32xbf16, #tpu.memory_space<vmem>>, vector<2x32xbf16>
    %404 = arith.extf %403 : vector<2x32xbf16> to vector<2x32xf32>
    %405 = vector.broadcast %400 : vector<2x1xf32> to vector<2x32xf32>
    %406 = arith.mulf %405, %402 : vector<2x32xf32>
    %407 = arith.mulf %406, %404 : vector<2x32xf32>
    %408 = arith.addf %399, %407 : vector<2x32xf32>
    %409 = arith.mulf %320, %324 : vector<2x1xf32>
    %c0_160 = arith.constant 0 : index
    %c14_161 = arith.constant 14 : index
    %c0_162 = arith.constant 0 : index
    %410 = vector.load %arg16[%c0_160, %c14_161, %c0_162] : memref<1x16x32xf32, #tpu.memory_space<vmem>>, vector<1x2x32xf32>
    %411 = vector.shape_cast %410 : vector<1x2x32xf32> to vector<2x32xf32>
    %c14_163 = arith.constant 14 : index
    %c0_164 = arith.constant 0 : index
    %412 = vector.load %arg17[%c14_163, %c0_164] : memref<16x32xbf16, #tpu.memory_space<vmem>>, vector<2x32xbf16>
    %413 = arith.extf %412 : vector<2x32xbf16> to vector<2x32xf32>
    %414 = vector.broadcast %409 : vector<2x1xf32> to vector<2x32xf32>
    %415 = arith.mulf %414, %411 : vector<2x32xf32>
    %416 = arith.mulf %415, %413 : vector<2x32xf32>
    %417 = arith.addf %408, %416 : vector<2x32xf32>
    %418 = arith.truncf %417 : vector<2x32xf32> to vector<2x32xbf16>
    %c0_165 = arith.constant 0 : index
    %c0_166 = arith.constant 0 : index
    %419 = vector.load %arg12[%c0_165, %c0_166] : memref<32x1xbf16, #tpu.memory_space<vmem>>, vector<32x1xbf16>
    %cst_167 = arith.constant dense<0.000000e+00> : vector<2x1xf32>
    %420 = tpu.matmul %418, %419, %cst_167 {dimension_numbers = #tpu.dot_dimension_numbers<[1], [0], [0], [1], [0, 0, 1, 1], [], []>} : vector<2x32xbf16>, vector<32x1xbf16>, vector<2x1xf32> -> vector<2x1xf32>
    %c0_168 = arith.constant 0 : index
    %c0_169 = arith.constant 0 : index
    %421 = vector.load %arg13[%c0_168, %c0_169] : memref<1x1xf32, #tpu.memory_space<vmem>>, vector<1x1xf32>
    %422 = vector.broadcast %421 : vector<1x1xf32> to vector<2x1xf32>
    %423 = arith.addf %420, %422 : vector<2x1xf32>
    %c0_170 = arith.constant 0 : index
    %c0_171 = arith.constant 0 : index
    %424 = vector.load %arg14[%c0_170, %c0_171] : memref<2x1xf32, #tpu.memory_space<vmem>>, vector<2x1xf32>
    tpu.vector_store %arg14[%c0_170, %c0_171], %423 {strides = array<i32>} : memref<2x1xf32, #tpu.memory_space<vmem>>, vector<2x1xf32>,
    return
  }
  func.func @transform_0(%arg0: i32) -> (i32, i32, i32) {
    %c0_i32 = arith.constant 0 : i32
    %c0_i32_0 = arith.constant 0 : i32
    %c0_i32_1 = arith.constant 0 : i32
    return %arg0, %c0_i32, %c0_i32_0 : i32, i32, i32
  }
  func.func @transform_1(%arg0: i32) -> (i32, i32, i32) {
    %c0_i32 = arith.constant 0 : i32
    %c0_i32_0 = arith.constant 0 : i32
    %c0_i32_1 = arith.constant 0 : i32
    return %arg0, %c0_i32, %c0_i32_0 : i32, i32, i32
  }
  func.func @transform_2(%arg0: i32) -> (i32, i32) {
    %c0_i32 = arith.constant 0 : i32
    %c0_i32_0 = arith.constant 0 : i32
    %c0_i32_1 = arith.constant 0 : i32
    return %c0_i32, %c0_i32_0 : i32, i32
  }
  func.func @transform_3(%arg0: i32) -> (i32, i32) {
    %c0_i32 = arith.constant 0 : i32
    %c0_i32_0 = arith.constant 0 : i32
    %c0_i32_1 = arith.constant 0 : i32
    return %c0_i32, %c0_i32_0 : i32, i32
  }
  func.func @transform_4(%arg0: i32) -> (i32, i32) {
    %c0_i32 = arith.constant 0 : i32
    %c0_i32_0 = arith.constant 0 : i32
    %c0_i32_1 = arith.constant 0 : i32
    return %c0_i32, %c0_i32_0 : i32, i32
  }
  func.func @transform_5(%arg0: i32) -> (i32, i32) {
    %c0_i32 = arith.constant 0 : i32
    %c0_i32_0 = arith.constant 0 : i32
    %c0_i32_1 = arith.constant 0 : i32
    return %c0_i32, %c0_i32_0 : i32, i32
  }
  func.func @transform_6(%arg0: i32) -> (i32, i32) {
    %c0_i32 = arith.constant 0 : i32
    %c0_i32_0 = arith.constant 0 : i32
    %c0_i32_1 = arith.constant 0 : i32
    return %c0_i32, %c0_i32_0 : i32, i32
  }
  func.func @transform_7(%arg0: i32) -> (i32, i32) {
    %c0_i32 = arith.constant 0 : i32
    %c0_i32_0 = arith.constant 0 : i32
    %c0_i32_1 = arith.constant 0 : i32
    return %c0_i32, %c0_i32_0 : i32, i32
  }
  func.func @transform_8(%arg0: i32) -> (i32, i32) {
    %c0_i32 = arith.constant 0 : i32
    %c0_i32_0 = arith.constant 0 : i32
    %c0_i32_1 = arith.constant 0 : i32
    return %c0_i32, %c0_i32_0 : i32, i32
  }
  func.func @transform_9(%arg0: i32) -> (i32, i32) {
    %c0_i32 = arith.constant 0 : i32
    %c0_i32_0 = arith.constant 0 : i32
    %c0_i32_1 = arith.constant 0 : i32
    return %c0_i32, %c0_i32_0 : i32, i32
  }
  func.func @transform_10(%arg0: i32) -> (i32, i32) {
    %c0_i32 = arith.constant 0 : i32
    %c0_i32_0 = arith.constant 0 : i32
    %c0_i32_1 = arith.constant 0 : i32
    return %c0_i32, %c0_i32_0 : i32, i32
  }
  func.func @transform_11(%arg0: i32) -> (i32, i32) {
    %c0_i32 = arith.constant 0 : i32
    %c0_i32_0 = arith.constant 0 : i32
    %c0_i32_1 = arith.constant 0 : i32
    return %c0_i32, %c0_i32_0 : i32, i32
  }
  func.func @transform_12(%arg0: i32) -> (i32, i32) {
    %c0_i32 = arith.constant 0 : i32
    %c0_i32_0 = arith.constant 0 : i32
    %c0_i32_1 = arith.constant 0 : i32
    return %c0_i32, %c0_i32_0 : i32, i32
  }
  func.func @transform_13(%arg0: i32) -> (i32, i32) {
    %c0_i32 = arith.constant 0 : i32
    %c0_i32_0 = arith.constant 0 : i32
    return %arg0, %c0_i32 : i32, i32
  }
  func.func @transform_14(%arg0: i32) -> (i32, i32) {
    %c0_i32 = arith.constant 0 : i32
    %c0_i32_0 = arith.constant 0 : i32
    return %arg0, %c0_i32 : i32, i32
  }
  func.func @transform_15(%arg0: i32) -> (i32, i32, i32) {
    %c0_i32 = arith.constant 0 : i32
    %c0_i32_0 = arith.constant 0 : i32
    %c0_i32_1 = arith.constant 0 : i32
    return %arg0, %c0_i32, %c0_i32_0 : i32, i32, i32
  }
}

</mosaic_0001>

<llo_original>
// kernel: tpu_custom_call.1
$region0: #{tpu_custom_call.1}
  #allocation0 [shape = 'u32[]', space=smem, size = 0x4, offset = 0x4, fixed_abs, tag = 'smem constant byte address 0x4 - core index']
  #allocation1 [shape = 'u32[72,128]{1,0:T(1,128)}', space=vmem, size = 0x9000, scoped, tag = 'internal scratch']
  #allocation2 [shape = 'bf16[16,32]{1,0:T(8,128)(2,1)}', space=vmem, size = 0x1000, scoped, tag = 'scratch operand']
  #allocation3 [shape = 'f32[16,192]{1,0:T(8,128)}', space=vmem, size = 0x4000, scoped, tag = 'scratch operand']
  #allocation4 [shape = 'bf16[16,64]{1,0:T(8,128)(2,1)}', space=vmem, size = 0x1000, scoped, tag = 'scratch operand']
  #allocation5 [shape = 'f32[16,32]{1,0:T(8,128)}', space=vmem, size = 0x2000, scoped, tag = 'scratch operand']
  #allocation6 [shape = 'f32[1,1]{1,0:T(1,128)S(1)}', space=vmem, size = 0x200, scoped, tag = 'scoped memory for tpu_custom_call.1']
  #allocation7 [shape = 'f32[1,1]{1,0:T(1,128)S(1)}', space=vmem, size = 0x200, scoped, tag = 'scoped memory for tpu_custom_call.1']
  %s0 = inlined_call_operand.hbm [shape: bf16[1,16,16], index: 0, kind: input, shape index: {}]
  %s1 = inlined_call_operand.vmem [shape: f32[1,16,1], index: 1, kind: input, shape index: {}]
  %s2 = inlined_call_operand.hbm [shape: bf16[16,32], index: 2, kind: input, shape index: {}]
  %s3 = inlined_call_operand.hbm [shape: bf16[32,192], index: 3, kind: input, shape index: {}]
  %s4 = inlined_call_operand.vmem [shape: bf16[64,192], index: 4, kind: input, shape index: {}]
  %s5 = inlined_call_operand.vmem [shape: f32[1,192], index: 5, kind: input, shape index: {}]
  %s6 = inlined_call_operand.vmem [shape: f32[1,64], index: 6, kind: input, shape index: {}]
  %s7 = inlined_call_operand.vmem [shape: f32[1,64], index: 7, kind: input, shape index: {}]
  %s8 = inlined_call_operand.<no memory space> [shape: f32[1,1], index: 8, kind: input, shape index: {}]
  %s9 = inlined_call_operand.vmem [shape: bf16[64,32], index: 9, kind: input, shape index: {}]
  %s10 = inlined_call_operand.vmem [shape: f32[1,32], index: 10, kind: input, shape index: {}]
  %s11 = inlined_call_operand.vmem [shape: bf16[32,1], index: 11, kind: input, shape index: {}]
  %s12 = inlined_call_operand.<no memory space> [shape: f32[1,1], index: 12, kind: input, shape index: {}]
  %s13 = inlined_call_operand.vmem [shape: f32[2,1], index: 13, kind: output, shape index: {0}]
  %s14 = inlined_call_operand.hbm [shape: f32[2,8], index: 14, kind: output, shape index: {1}]
  %s15 = inlined_call_operand.hbm [shape: f32[1,16,32], index: 15, kind: output, shape index: {2}]
  %16 = xla_tuple %s13, %s14, %s15
  %s17 = sld [smem:[#allocation0]]
  $region90: #{tpu_custom_call.1} parent=0
    _
  %s19 = ssub.s32 1, %s17
  %s20 = scalar_select 0, %s19, %s17
  %v21 = vstv %s8
  %22 = vst [vmem:[#allocation6] sm:$0x1] %v21
  %v23 = vstv %s12
  %24 = vst [vmem:[#allocation7] sm:$0x1] %v23
  $region1: #{tpu_custom_call.1} parent=0
    #allocation8 [shape = 'u8[4096]{0}', space=vmem, size = 0x1000, scoped, tag = 'input window, operand 0, single buffered']
    #allocation9 [shape = 's32[1]{0}', space=sflag, size = 0x4, scoped, tag = 'scoped memory for tpu_custom_call.1']
    #allocation10 [shape = 's32[1]{0}', space=sflag, size = 0x4, scoped, tag = 'scoped memory for tpu_custom_call.1']
    #allocation11 [shape = 'u8[4096]{0}', space=vmem, size = 0x1000, scoped, tag = 'input window, operand 2, single buffered']
    #allocation12 [shape = 's32[1]{0}', space=sflag, size = 0x4, scoped, tag = 'scoped memory for tpu_custom_call.1']
    #allocation13 [shape = 'u8[16384]{0}', space=vmem, size = 0x4000, scoped, tag = 'input window, operand 3, single buffered']
    #allocation14 [shape = 'u8[1024]{0}', space=vmem, size = 0x400, scoped, tag = 'output window, operand 1, single buffered']
    #allocation15 [shape = 'u8[8192]{0}', space=vmem, size = 0x2000, scoped, tag = 'output window, operand 2, single buffered']
    #allocation16 [shape = 's32[1]{0}', space=sflag, size = 0x4, scoped, tag = 'scoped memory for tpu_custom_call.1']
    %25 = vsyncpa [#allocation9], 0
    %26 = vsyncpa [#allocation12], 0
    %27 = vsyncpa [#allocation10], 0
    %28 = vsyncpa [#allocation16], 0
    // Predicated region
    $region2: #{tpu_custom_call.1} parent=1 // pred_check
      _
    $region3: #{tpu_custom_call.1} parent=1 // pred_check_branch
      %30 = sbr.rel (0) target = $region5
    $region4: #{tpu_custom_call.1} parent=1 // pred_region
      %32 = vsyncadd [#allocation9], 0
      %s33 = sshll.u32 %s0, 4
      %s34 = int_to_ptr.hbm [resolvable:$true] %s33
      %s35 = sshll.u32 [#allocation8], 4
      %s36 = int_to_ptr.vmem [resolvable:$true] %s35
      %41 = dma.hbm_to_vmem [thread:$0]  %s34, 128, %s36, [#allocation9], 64, 64, 4
    $region5: #{tpu_custom_call.1} parent=1 // pred_fallthru
      _
    // Predicated region
    $region6: #{tpu_custom_call.1} parent=1 // pred_check
      _
    $region7: #{tpu_custom_call.1} parent=1 // pred_check_branch
      %43 = sbr.rel (0) target = $region9
    $region8: #{tpu_custom_call.1} parent=1 // pred_region
      _
    $region9: #{tpu_custom_call.1} parent=1 // pred_fallthru
      _
    // Predicated region
    $region10: #{tpu_custom_call.1} parent=1 // pred_check
      _
    $region11: #{tpu_custom_call.1} parent=1 // pred_check_branch
      %45 = sbr.rel (0) target = $region13
    $region12: #{tpu_custom_call.1} parent=1 // pred_region
      %47 = vsyncadd [#allocation12], 0
      %s48 = sshll.u32 %s2, 4
      %s49 = int_to_ptr.hbm [resolvable:$true] %s48
      %s50 = sshll.u32 [#allocation11], 4
      %s51 = int_to_ptr.vmem [resolvable:$true] %s50
      %56 = dma.hbm_to_vmem [thread:$0]  %s49, 128, %s51, [#allocation12], 64, 64, 4
    $region13: #{tpu_custom_call.1} parent=1 // pred_fallthru
      _
    // Predicated region
    $region14: #{tpu_custom_call.1} parent=1 // pred_check
      _
    $region15: #{tpu_custom_call.1} parent=1 // pred_check_branch
      %58 = sbr.rel (0) target = $region17
    $region16: #{tpu_custom_call.1} parent=1 // pred_region
      %60 = vsyncadd [#allocation12], 0
      %s61 = sshll.u32 %s3, 4
      %s62 = int_to_ptr.hbm [resolvable:$true] %s61
      %s63 = sshll.u32 [#allocation13], 4
      %s64 = int_to_ptr.vmem [resolvable:$true] %s63
      %69 = dma.hbm_to_vmem [thread:$0]  %s62, 512, %s64, [#allocation12], 128, 128, 8
    $region17: #{tpu_custom_call.1} parent=1 // pred_fallthru
      _
    // Predicated region
    $region18: #{tpu_custom_call.1} parent=1 // pred_check
      _
    $region19: #{tpu_custom_call.1} parent=1 // pred_check_branch
      %71 = sbr.rel (0) target = $region21
    $region20: #{tpu_custom_call.1} parent=1 // pred_region
      _
    $region21: #{tpu_custom_call.1} parent=1 // pred_fallthru
      _
    // Predicated region
    $region22: #{tpu_custom_call.1} parent=1 // pred_check
      _
    $region23: #{tpu_custom_call.1} parent=1 // pred_check_branch
      %73 = sbr.rel (0) target = $region25
    $region24: #{tpu_custom_call.1} parent=1 // pred_region
      _
    $region25: #{tpu_custom_call.1} parent=1 // pred_fallthru
      _
    // Predicated region
    $region26: #{tpu_custom_call.1} parent=1 // pred_check
      _
    $region27: #{tpu_custom_call.1} parent=1 // pred_check_branch
      %75 = sbr.rel (0) target = $region29
    $region28: #{tpu_custom_call.1} parent=1 // pred_region
      _
    $region29: #{tpu_custom_call.1} parent=1 // pred_fallthru
      _
    // Predicated region
    $region30: #{tpu_custom_call.1} parent=1 // pred_check
      _
    $region31: #{tpu_custom_call.1} parent=1 // pred_check_branch
      %77 = sbr.rel (0) target = $region33
    $region32: #{tpu_custom_call.1} parent=1 // pred_region
      _
    $region33: #{tpu_custom_call.1} parent=1 // pred_fallthru
      _
    // Predicated region
    $region34: #{tpu_custom_call.1} parent=1 // pred_check
      _
    $region35: #{tpu_custom_call.1} parent=1 // pred_check_branch
      %79 = sbr.rel (0) target = $region37
    $region36: #{tpu_custom_call.1} parent=1 // pred_region
      _
    $region37: #{tpu_custom_call.1} parent=1 // pred_fallthru
      _
    // Predicated region
    $region38: #{tpu_custom_call.1} parent=1 // pred_check
      _
    $region39: #{tpu_custom_call.1} parent=1 // pred_check_branch
      %81 = sbr.rel (0) target = $region41
    $region40: #{tpu_custom_call.1} parent=1 // pred_region
      _
    $region41: #{tpu_custom_call.1} parent=1 // pred_fallthru
      _
    // Predicated region
    $region42: #{tpu_custom_call.1} parent=1 // pred_check
      _
    $region43: #{tpu_custom_call.1} parent=1 // pred_check_branch
      %83 = sbr.rel (0) target = $region45
    $region44: #{tpu_custom_call.1} parent=1 // pred_region
      _
    $region45: #{tpu_custom_call.1} parent=1 // pred_fallthru
      _
    // Predicated region
    $region46: #{tpu_custom_call.1} parent=1 // pred_check
      _
    $region47: #{tpu_custom_call.1} parent=1 // pred_check_branch
      %85 = sbr.rel (0) target = $region49
    $region48: #{tpu_custom_call.1} parent=1 // pred_region
      _
    $region49: #{tpu_custom_call.1} parent=1 // pred_fallthru
      _
    // Predicated region
    $region50: #{tpu_custom_call.1} parent=1 // pred_check
      _
    $region51: #{tpu_custom_call.1} parent=1 // pred_check_branch
      %87 = sbr.rel (0) target = $region53
    $region52: #{tpu_custom_call.1} parent=1 // pred_region
      _
    $region53: #{tpu_custom_call.1} parent=1 // pred_fallthru
      _
    // Predicated region
    $region54: #{tpu_custom_call.1} parent=1 // pred_check
      _
    $region55: #{tpu_custom_call.1} parent=1 // pred_check_branch
      %89 = sbr.rel (0) target = $region57
    $region56: #{tpu_custom_call.1} parent=1 // pred_region
      %91 = dma.done [#allocation9], 128
    $region57: #{tpu_custom_call.1} parent=1 // pred_fallthru
      _
    // Predicated region
    $region58: #{tpu_custom_call.1} parent=1 // pred_check
      _
    $region59: #{tpu_custom_call.1} parent=1 // pred_check_branch
      %93 = sbr.rel (0) target = $region61
    $region60: #{tpu_custom_call.1} parent=1 // pred_region
      %95 = dma.done [#allocation12], 128
    $region61: #{tpu_custom_call.1} parent=1 // pred_fallthru
      _
    // Predicated region
    $region62: #{tpu_custom_call.1} parent=1 // pred_check
      _
    $region63: #{tpu_custom_call.1} parent=1 // pred_check_branch
      %97 = sbr.rel (0) target = $region65
    $region64: #{tpu_custom_call.1} parent=1 // pred_region
      %99 = dma.done [#allocation12], 512
    $region65: #{tpu_custom_call.1} parent=1 // pred_fallthru
      _
    %v101 = vld [vmem:[#allocation8] sm:$0xf]
    %v102 = vld [vmem:[#allocation8 + $0x4] sm:$0xf]
    %v103 = vld [vmem:[#allocation11] sm:$0xf]
    %v104 = vld [vmem:[#allocation11 + $0x4] sm:$0xf]
    %v107 = vunpack.c.l.b16 %v101
    %v108 = vunpack.c.l.b16 %v102
    %v109 = vpack.c.b16 %v108, %v107
    %v112 = vunpack.c.l.b16 %v103
    %v113 = vunpack.c.l.b16 %v104
    %v114 = vpack.c.b16 %v113, %v112
    %vm116 = vcmask 130048
    %v118 = vsel %vm116, %v109, 0
    %120 = vmatpush.bf16.msra.mxu0 0
    %121 = vmatpush.bf16.msra.mxu0 0
    %122 = vmatpush.bf16.msra.mxu0 0
    %123 = vmatpush.bf16.msra.mxu0 0
    %124 = vmatpush.bf16.msra.mxu0 0
    %125 = vmatpush.bf16.msra.mxu0 0
    %126 = vmatpush.bf16.msra.mxu0 0
    %127 = vmatpush.bf16.msra.mxu0 %v114
    %128 = vmatmul.bf16.gmra.mxu0 %v118
    %v129 = vpop.f32.mrf.mxu0
    %v130 = vadd.f32 0.0, %v129
    %v131 = vpop.f32.mrf.mxu0
    %v132 = vadd.f32 0.0, %v131
    %133 = vdwg.mxu0
    %v134 = vpack.c.bf16 %v130, %v130
    %v135 = vpack.c.bf16 %v132, %v132
    %vm136 = vcmask 257024
    %137 = vst.msk [vmem:[#allocation2] sm:$0xf] %vm136, %v134
    %138 = vst.msk [vmem:[#allocation2 + $0x4] sm:$0xf] %vm136, %v135
    %v139 = vld [vmem:[#allocation13] sm:$0xff]
    %v140 = vld [vmem:[#allocation13 + $0x8] sm:$0xff]
    %v141 = vld [vmem:[#allocation13 + $0x10] sm:$0xff]
    %v142 = vld [vmem:[#allocation13 + $0x18] sm:$0xff]
    %v143 = vld [vmem:[%s5] sm:$0x3]
    %v145 = vperm.slane %v143, 0
    %v146 = vperm.slane %v143, 1
    %v151 = vunpack.c.l.b16 %v134
    %v152 = vunpack.c.l.b16 %v135
    %v153 = vpack.c.b16 %v152, %v151
    %v158 = vunpack.c.l.b16 %v139
    %v159 = vunpack.c.h.b16 %v139
    %v160 = vunpack.c.l.b16 %v140
    %v161 = vunpack.c.h.b16 %v140
    %v162 = vunpack.c.l.b16 %v141
    %v163 = vunpack.c.h.b16 %v141
    %v164 = vunpack.c.l.b16 %v142
    %v165 = vunpack.c.h.b16 %v142
    %v166 = vpack.c.b16 %v160, %v158
    %v167 = vpack.c.b16 %v161, %v159
    %v168 = vpack.c.b16 %v164, %v162
    %v169 = vpack.c.b16 %v165, %v163
    %vm174 = vcmask 261120
    %v176 = vsel %vm174, %v153, 0
    %178 = vmatpush.bf16.msra.mxu0 0
    %179 = vmatpush.bf16.msra.mxu0 0
    %180 = vmatpush.bf16.msra.mxu0 0
    %181 = vmatpush.bf16.msra.mxu0 0
    %182 = vmatpush.bf16.msra.mxu0 0
    %183 = vmatpush.bf16.msra.mxu0 0
    %184 = vmatpush.bf16.msra.mxu0 %v168
    %185 = vmatpush.bf16.msra.mxu0 %v166
    %186 = vmatmul.bf16.gmra.mxu0 %v176
    %v187 = vpop.f32.mrf.mxu0
    %v188 = vadd.f32 %v145, %v187
    %v189 = vpop.f32.mrf.mxu0
    %v190 = vadd.f32 %v145, %v189
    %191 = vdwg.mxu0
    %192 = vmatpush.bf16.msra.mxu0 0
    %193 = vmatpush.bf16.msra.mxu0 0
    %194 = vmatpush.bf16.msra.mxu0 0
    %195 = vmatpush.bf16.msra.mxu0 0
    %196 = vmatpush.bf16.msra.mxu0 0
    %197 = vmatpush.bf16.msra.mxu0 0
    %198 = vmatpush.bf16.msra.mxu0 %v169
    %199 = vmatpush.bf16.msra.mxu0 %v167
    %200 = vmatmul.bf16.gmra.mxu0 %v176
    %v201 = vpop.f32.mrf.mxu0
    %v202 = vadd.f32 %v146, %v201
    %v203 = vpop.f32.mrf.mxu0
    %v204 = vadd.f32 %v146, %v203
    %205 = vdwg.mxu0
    %206 = vst [vmem:[#allocation3] sm:$0xff] %v188
    %vm207 = vcmask 523264
    %208 = vst.msk [vmem:[#allocation3 + $0x8] sm:$0xff] %vm207, %v202
    %209 = vst [vmem:[#allocation3 + $0x10] sm:$0xff] %v190
    %210 = vst.msk [vmem:[#allocation3 + $0x18] sm:$0xff] %vm207, %v204
    %v211 = vld [vmem:[%s4] sm:$0xff]
    %v212 = vld [vmem:[%s4 + $0x8] sm:$0xff]
    %v213 = vld [vmem:[%s4 + $0x10] sm:$0xff]
    %v214 = vld [vmem:[%s4 + $0x18] sm:$0xff]
    %v215 = vld [vmem:[%s4 + $0x20] sm:$0xff]
    %v216 = vld [vmem:[%s4 + $0x28] sm:$0xff]
    %v217 = vld [vmem:[%s4 + $0x30] sm:$0xff]
    %v218 = vld [vmem:[%s4 + $0x38] sm:$0xff]
    %v219 = vld [vmem:[%s6] sm:$0x1]
    %v220 = vld [vmem:[%s7] sm:$0x1]
    %v221 = vld [vmem:[#allocation6] sm:$0x1]
    %v222 = vld [vmem:[#allocation3] sm:$0x3]
    %v223 = vld [vmem:[#allocation3 + $0x8] sm:$0x3]
    %v232 = vunpack.c.l.b16 %v211
    %v233 = vunpack.c.h.b16 %v211
    %v234 = vunpack.c.l.b16 %v212
    %v235 = vunpack.c.h.b16 %v212
    %v236 = vunpack.c.l.b16 %v213
    %v237 = vunpack.c.h.b16 %v213
    %v238 = vunpack.c.l.b16 %v214
    %v239 = vunpack.c.h.b16 %v214
    %v240 = vunpack.c.l.b16 %v215
    %v241 = vunpack.c.h.b16 %v215
    %v242 = vunpack.c.l.b16 %v216
    %v243 = vunpack.c.h.b16 %v216
    %v244 = vunpack.c.l.b16 %v217
    %v245 = vunpack.c.h.b16 %v217
    %v246 = vunpack.c.l.b16 %v218
    %v247 = vunpack.c.h.b16 %v218
    %v248 = vpack.c.b16 %v234, %v232
    %v249 = vpack.c.b16 %v235, %v233
    %v250 = vpack.c.b16 %v238, %v236
    %v251 = vpack.c.b16 %v239, %v237
    %v252 = vpack.c.b16 %v242, %v240
    %v253 = vpack.c.b16 %v243, %v241
    %v254 = vpack.c.b16 %v246, %v244
    %v255 = vpack.c.b16 %v247, %v245
    %v265 = vsel %vm207, 0, 0
    %267 = vmatpush.bf16.msra.mxu0 0
    %268 = vmatpush.bf16.msra.mxu0 0
    %269 = vmatpush.bf16.msra.mxu0 0
    %270 = vmatpush.bf16.msra.mxu0 0
    %271 = vmatpush.bf16.msra.mxu0 %v254
    %272 = vmatpush.bf16.msra.mxu0 %v252
    %273 = vmatpush.bf16.msra.mxu0 %v250
    %274 = vmatpush.bf16.msra.mxu0 %v248
    %275 = vmatmul.bf16.gmra.mxu0 %v265
    %v276 = vpop.f32.mrf.mxu0
    %v277 = vadd.f32 0.0, %v276
    %v278 = vpop.f32.mrf.mxu0
    %279 = vdwg.mxu0
    %280 = vmatpush.bf16.msra.mxu0 0
    %281 = vmatpush.bf16.msra.mxu0 0
    %282 = vmatpush.bf16.msra.mxu0 0
    %283 = vmatpush.bf16.msra.mxu0 0
    %284 = vmatpush.bf16.msra.mxu0 %v255
    %285 = vmatpush.bf16.msra.mxu0 %v253
    %286 = vmatpush.bf16.msra.mxu0 %v251
    %287 = vmatpush.bf16.msra.mxu0 %v249
    %288 = vmatmul.bf16.gmra.mxu0 %v265
    %v289 = vpop.f32.mrf.mxu0
    %v290 = vadd.f32 0.0, %v289
    %v291 = vpop.f32.mrf.mxu0
    %292 = vdwg.mxu0
    %v293 = vadd.f32 %v222, %v277
    %v294 = vxor.u32 %v293, 2147483648
    %v295 = vmul.f32 %v294, 1.442695
    %v296 = vpow.pop %v295
    %v297 = vadd.f32 %v296, 1.0
    %v298 = vrcp.pop %v297
    %v299 = vmul.f32 %v297, %v298
    %v300 = vsub.f32 1.0, %v299
    %v301 = vmul.f32 %v298, %v300
    %v302 = vadd.f32 %v298, %v301
    %vm303 = vweird.f32 %v297
    %vm304 = vweird.f32 %v298
    %vm305 = vmor %vm303, %vm304
    %v306 = vsel %vm305, %v298, %v302
    %v307 = vand.u32 2147483647, %v297
    %vm308 = vcmp.eq.f32.partialorder %v307, 8.507059e+37
    %v309 = vand.u32 %v297, 2147483648
    %v310 = vor.u32 1.1754944e-38, %v309
    %v311 = vsel %vm308, %v310, %v306
    %v312 = vmul.f32 1.0, %v311
    %v314 = vperm.slane %v219, 0
    %v316 = vadd.f32 %v290, %v314
    %v317 = vmul.f32 %v312, %v316
    %v318 = vadd.f32 %v223, %v317
    %v319 = vtanh.pop %v318
    %v320 = vsub.f32 1.0, %v312
    %322 = vrot.lane.b32.xlu0 %v319, 64
    %v323 = vpop.permute.xlu0 %322
    %v325 = vmul.f32 %v320, %v323
    %v326 = vmul.f32 %v312, 0.0
    %v327 = vadd.f32 %v325, %v326
    %v328 = vpack.c.bf16 %v327, %v327
    %330 = vrot.lane.b32.xlu0 %v328, 64
    %v331 = vpop.permute.xlu0 %330
    %vm333 = vcmask 516096
    %334 = vst.msk [vmem:[#allocation4] sm:$0x1] %vm333, %v331
    %v336 = vperm.slane %v220, 0
    %337 = vrot.lane.b32.xlu0 %v336, 64
    %v338 = vpop.permute.xlu0 %337
    %v340 = vmul.f32 %v327, %v338
    %342 = vrot.lane.b32.xlu0 %v340, 64
    %v343 = vpop.permute.xlu0 %342
    %vm345 = vcmask 517120
    %v346 = vsel %vm345, %v343, 0.0
    %347 = vadd.xlane.f32.xlu0 %v346
    %v348 = vpop.xlane.xlu0 %347
    %v350 = vperm.slane %v221, 0
    %v352 = vadd.f32 %v348, %v350
    %v353 = vmul.f32 %v352, 1.442695
    %v354 = vpow.pop %v353
    %v355 = vld [vmem:[%s1] sm:$0x3]
    %v356 = vmul.f32 %v354, %v355
    %v357 = vadd.f32 %v356, 0.0
    %v358 = vld [vmem:[#allocation3] sm:$0xc]
    %v359 = vld [vmem:[#allocation3 + $0x8] sm:$0xc]
    %v360 = vunpack.c.l.b16 %v328
    %v361 = vpack.c.b16 %v360, %v360
    %362 = vrot.lane.b32.xlu0 %v361, 64
    %v363 = vpop.permute.xlu0 %362
    %v365 = vsel %vm207, %v363, 0
    %367 = vmatpush.bf16.msra.mxu0 0
    %368 = vmatpush.bf16.msra.mxu0 0
    %369 = vmatpush.bf16.msra.mxu0 0
    %370 = vmatpush.bf16.msra.mxu0 0
    %371 = vmatpush.bf16.msra.mxu0 %v254
    %372 = vmatpush.bf16.msra.mxu0 %v252
    %373 = vmatpush.bf16.msra.mxu0 %v250
    %374 = vmatpush.bf16.msra.mxu0 %v248
    %375 = vmatmul.bf16.gmra.mxu0 %v365
    %v376 = vpop.f32.mrf.mxu0
    %v377 = vadd.f32 0.0, %v376
    %v378 = vpop.f32.mrf.mxu0
    %379 = vdwg.mxu0
    %380 = vmatpush.bf16.msra.mxu0 0
    %381 = vmatpush.bf16.msra.mxu0 0
    %382 = vmatpush.bf16.msra.mxu0 0
    %383 = vmatpush.bf16.msra.mxu0 0
    %384 = vmatpush.bf16.msra.mxu0 %v255
    %385 = vmatpush.bf16.msra.mxu0 %v253
    %386 = vmatpush.bf16.msra.mxu0 %v251
    %387 = vmatpush.bf16.msra.mxu0 %v249
    %388 = vmatmul.bf16.gmra.mxu0 %v365
    %v389 = vpop.f32.mrf.mxu0
    %v390 = vadd.f32 0.0, %v389
    %v391 = vpop.f32.mrf.mxu0
    %392 = vdwg.mxu0
    %v394 = vrot.slane %v377, 6
    %v396 = vadd.f32 %v358, %v394
    %v397 = vxor.u32 %v396, 2147483648
    %v398 = vmul.f32 %v397, 1.442695
    %v399 = vpow.pop %v398
    %v400 = vadd.f32 %v399, 1.0
    %v401 = vrcp.pop %v400
    %v402 = vmul.f32 %v400, %v401
    %v403 = vsub.f32 1.0, %v402
    %v404 = vmul.f32 %v401, %v403
    %v405 = vadd.f32 %v401, %v404
    %vm406 = vweird.f32 %v400
    %vm407 = vweird.f32 %v401
    %vm408 = vmor %vm406, %vm407
    %v409 = vsel %vm408, %v401, %v405
    %v410 = vand.u32 2147483647, %v400
    %vm411 = vcmp.eq.f32.partialorder %v410, 8.507059e+37
    %v412 = vand.u32 %v400, 2147483648
    %v413 = vor.u32 1.1754944e-38, %v412
    %v414 = vsel %vm411, %v413, %v409
    %v415 = vmul.f32 1.0, %v414
    %v416 = vadd.f32 %v390, %v314
    %v418 = vrot.slane %v416, 6
    %v420 = vmul.f32 %v415, %v418
    %v421 = vadd.f32 %v359, %v420
    %v422 = vtanh.pop %v421
    %v423 = vsub.f32 1.0, %v415
    %425 = vrot.lane.b32.xlu0 %v422, 64
    %v426 = vpop.permute.xlu0 %425
    %v428 = vmul.f32 %v423, %v426
    %v430 = vrot.slane %v327, 6
    %v432 = vmul.f32 %v415, %v430
    %v433 = vadd.f32 %v428, %v432
    %v434 = vpack.c.bf16 %v433, %v433
    %436 = vrot.lane.b32.xlu0 %v434, 64
    %v437 = vpop.permute.xlu0 %436
    %vm439 = vcmask 517121
    %440 = vst.msk [vmem:[#allocation4] sm:$0x2] %vm439, %v437
    %v441 = vmul.f32 %v433, %v338
    %443 = vrot.lane.b32.xlu0 %v441, 64
    %v444 = vpop.permute.xlu0 %443
    %vm446 = vcmask 519170
    %v447 = vsel %vm446, %v444, 0.0
    %448 = vadd.xlane.f32.xlu0 %v447
    %v449 = vpop.xlane.xlu0 %448
    %v450 = vadd.f32 %v449, %v350
    %v451 = vmul.f32 %v450, 1.442695
    %v452 = vpow.pop %v451
    %v453 = vld [vmem:[%s1 + $0x2] sm:$0x3]
    %v455 = vrot.slane %v453, 6
    %v457 = vmul.f32 %v452, %v455
    %v459 = vrot.slane %v457, 2
    %v461 = vadd.f32 %v357, %v459
    %v462 = vld [vmem:[#allocation3] sm:$0x30]
    %v463 = vld [vmem:[#allocation3 + $0x8] sm:$0x30]
    %v464 = vunpack.c.l.b16 %v434
    %v465 = vpack.c.b16 %v464, %v464
    %v466 = vrot.slane %v465, 1
    %467 = vrot.lane.b32.xlu0 %v466, 64
    %v468 = vpop.permute.xlu0 %467
    %v470 = vsel %vm207, %v468, 0
    %472 = vmatpush.bf16.msra.mxu0 0
    %473 = vmatpush.bf16.msra.mxu0 0
    %474 = vmatpush.bf16.msra.mxu0 0
    %475 = vmatpush.bf16.msra.mxu0 0
    %476 = vmatpush.bf16.msra.mxu0 %v254
    %477 = vmatpush.bf16.msra.mxu0 %v252
    %478 = vmatpush.bf16.msra.mxu0 %v250
    %479 = vmatpush.bf16.msra.mxu0 %v248
    %480 = vmatmul.bf16.gmra.mxu0 %v470
    %v481 = vpop.f32.mrf.mxu0
    %v482 = vadd.f32 0.0, %v481
    %v483 = vpop.f32.mrf.mxu0
    %484 = vdwg.mxu0
    %485 = vmatpush.bf16.msra.mxu0 0
    %486 = vmatpush.bf16.msra.mxu0 0
    %487 = vmatpush.bf16.msra.mxu0 0
    %488 = vmatpush.bf16.msra.mxu0 0
    %489 = vmatpush.bf16.msra.mxu0 %v255
    %490 = vmatpush.bf16.msra.mxu0 %v253
    %491 = vmatpush.bf16.msra.mxu0 %v251
    %492 = vmatpush.bf16.msra.mxu0 %v249
    %493 = vmatmul.bf16.gmra.mxu0 %v470
    %v494 = vpop.f32.mrf.mxu0
    %v495 = vadd.f32 0.0, %v494
    %v496 = vpop.f32.mrf.mxu0
    %497 = vdwg.mxu0
    %v499 = vrot.slane %v482, 4
    %v501 = vadd.f32 %v462, %v499
    %v502 = vxor.u32 %v501, 2147483648
    %v503 = vmul.f32 %v502, 1.442695
    %v504 = vpow.pop %v503
    %v505 = vadd.f32 %v504, 1.0
    %v506 = vrcp.pop %v505
    %v507 = vmul.f32 %v505, %v506
    %v508 = vsub.f32 1.0, %v507
    %v509 = vmul.f32 %v506, %v508
    %v510 = vadd.f32 %v506, %v509
    %vm511 = vweird.f32 %v505
    %vm512 = vweird.f32 %v506
    %vm513 = vmor %vm511, %vm512
    %v514 = vsel %vm513, %v506, %v510
    %v515 = vand.u32 2147483647, %v505
    %vm516 = vcmp.eq.f32.partialorder %v515, 8.507059e+37
    %v517 = vand.u32 %v505, 2147483648
    %v518 = vor.u32 1.1754944e-38, %v517
    %v519 = vsel %vm516, %v518, %v514
    %v520 = vmul.f32 1.0, %v519
    %v521 = vadd.f32 %v495, %v314
    %v523 = vrot.slane %v521, 4
    %v525 = vmul.f32 %v520, %v523
    %v526 = vadd.f32 %v463, %v525
    %v527 = vtanh.pop %v526
    %v528 = vsub.f32 1.0, %v520
    %530 = vrot.lane.b32.xlu0 %v527, 64
    %v531 = vpop.permute.xlu0 %530
    %v533 = vmul.f32 %v528, %v531
    %v535 = vrot.slane %v433, 6
    %v537 = vmul.f32 %v520, %v535
    %v538 = vadd.f32 %v533, %v537
    %v539 = vpack.c.bf16 %v538, %v538
    %541 = vrot.lane.b32.xlu0 %v539, 64
    %v542 = vpop.permute.xlu0 %541
    %vm544 = vcmask 518146
    %545 = vst.msk [vmem:[#allocation4] sm:$0x4] %vm544, %v542
    %v546 = vmul.f32 %v538, %v338
    %548 = vrot.lane.b32.xlu0 %v546, 64
    %v549 = vpop.permute.xlu0 %548
    %vm551 = vcmask 521220
    %v552 = vsel %vm551, %v549, 0.0
    %553 = vadd.xlane.f32.xlu0 %v552
    %v554 = vpop.xlane.xlu0 %553
    %v555 = vadd.f32 %v554, %v350
    %v556 = vmul.f32 %v555, 1.442695
    %v557 = vpow.pop %v556
    %v558 = vld [vmem:[%s1 + $0x4] sm:$0x3]
    %v560 = vrot.slane %v558, 4
    %v562 = vmul.f32 %v557, %v560
    %v564 = vrot.slane %v562, 4
    %v566 = vadd.f32 %v461, %v564
    %v567 = vld [vmem:[#allocation3] sm:$0xc0]
    %v568 = vld [vmem:[#allocation3 + $0x8] sm:$0xc0]
    %v569 = vunpack.c.l.b16 %v539
    %v570 = vpack.c.b16 %v569, %v569
    %v571 = vrot.slane %v570, 2
    %572 = vrot.lane.b32.xlu0 %v571, 64
    %v573 = vpop.permute.xlu0 %572
    %v575 = vsel %vm207, %v573, 0
    %577 = vmatpush.bf16.msra.mxu0 0
    %578 = vmatpush.bf16.msra.mxu0 0
    %579 = vmatpush.bf16.msra.mxu0 0
    %580 = vmatpush.bf16.msra.mxu0 0
    %581 = vmatpush.bf16.msra.mxu0 %v254
    %582 = vmatpush.bf16.msra.mxu0 %v252
    %583 = vmatpush.bf16.msra.mxu0 %v250
    %584 = vmatpush.bf16.msra.mxu0 %v248
    %585 = vmatmul.bf16.gmra.mxu0 %v575
    %v586 = vpop.f32.mrf.mxu0
    %v587 = vadd.f32 0.0, %v586
    %v588 = vpop.f32.mrf.mxu0
    %589 = vdwg.mxu0
    %590 = vmatpush.bf16.msra.mxu0 0
    %591 = vmatpush.bf16.msra.mxu0 0
    %592 = vmatpush.bf16.msra.mxu0 0
    %593 = vmatpush.bf16.msra.mxu0 0
    %594 = vmatpush.bf16.msra.mxu0 %v255
    %595 = vmatpush.bf16.msra.mxu0 %v253
    %596 = vmatpush.bf16.msra.mxu0 %v251
    %597 = vmatpush.bf16.msra.mxu0 %v249
    %598 = vmatmul.bf16.gmra.mxu0 %v575
    %v599 = vpop.f32.mrf.mxu0
    %v600 = vadd.f32 0.0, %v599
    %v601 = vpop.f32.mrf.mxu0
    %602 = vdwg.mxu0
    %v604 = vrot.slane %v587, 2
    %v606 = vadd.f32 %v567, %v604
    %v607 = vxor.u32 %v606, 2147483648
    %v608 = vmul.f32 %v607, 1.442695
    %v609 = vpow.pop %v608
    %v610 = vadd.f32 %v609, 1.0
    %v611 = vrcp.pop %v610
    %v612 = vmul.f32 %v610, %v611
    %v613 = vsub.f32 1.0, %v612
    %v614 = vmul.f32 %v611, %v613
    %v615 = vadd.f32 %v611, %v614
    %vm616 = vweird.f32 %v610
    %vm617 = vweird.f32 %v611
    %vm618 = vmor %vm616, %vm617
    %v619 = vsel %vm618, %v611, %v615
    %v620 = vand.u32 2147483647, %v610
    %vm621 = vcmp.eq.f32.partialorder %v620, 8.507059e+37
    %v622 = vand.u32 %v610, 2147483648
    %v623 = vor.u32 1.1754944e-38, %v622
    %v624 = vsel %vm621, %v623, %v619
    %v625 = vmul.f32 1.0, %v624
    %v626 = vadd.f32 %v600, %v314
    %v628 = vrot.slane %v626, 2
    %v630 = vmul.f32 %v625, %v628
    %v631 = vadd.f32 %v568, %v630
    %v632 = vtanh.pop %v631
    %v633 = vsub.f32 1.0, %v625
    %635 = vrot.lane.b32.xlu0 %v632, 64
    %v636 = vpop.permute.xlu0 %635
    %v638 = vmul.f32 %v633, %v636
    %v640 = vrot.slane %v538, 6
    %v642 = vmul.f32 %v625, %v640
    %v643 = vadd.f32 %v638, %v642
    %v644 = vpack.c.bf16 %v643, %v643
    %646 = vrot.lane.b32.xlu0 %v644, 64
    %v647 = vpop.permute.xlu0 %646
    %vm649 = vcmask 519171
    %650 = vst.msk [vmem:[#allocation4] sm:$0x8] %vm649, %v647
    %v651 = vmul.f32 %v643, %v338
    %653 = vrot.lane.b32.xlu0 %v651, 64
    %v654 = vpop.permute.xlu0 %653
    %vm656 = vcmask 523270
    %v657 = vsel %vm656, %v654, 0.0
    %658 = vadd.xlane.f32.xlu0 %v657
    %v659 = vpop.xlane.xlu0 %658
    %v660 = vadd.f32 %v659, %v350
    %v661 = vmul.f32 %v660, 1.442695
    %v662 = vpow.pop %v661
    %v663 = vld [vmem:[%s1 + $0x6] sm:$0x3]
    %v665 = vrot.slane %v663, 2
    %v667 = vmul.f32 %v662, %v665
    %v669 = vrot.slane %v667, 6
    %v671 = vadd.f32 %v566, %v669
    %v672 = vld [vmem:[#allocation3 + $0x10] sm:$0x3]
    %v673 = vld [vmem:[#allocation3 + $0x18] sm:$0x3]
    %v674 = vunpack.c.l.b16 %v644
    %v675 = vpack.c.b16 %v674, %v674
    %v676 = vrot.slane %v675, 3
    %677 = vrot.lane.b32.xlu0 %v676, 64
    %v678 = vpop.permute.xlu0 %677
    %v680 = vsel %vm207, %v678, 0
    %682 = vmatpush.bf16.msra.mxu0 0
    %683 = vmatpush.bf16.msra.mxu0 0
    %684 = vmatpush.bf16.msra.mxu0 0
    %685 = vmatpush.bf16.msra.mxu0 0
    %686 = vmatpush.bf16.msra.mxu0 %v254
    %687 = vmatpush.bf16.msra.mxu0 %v252
    %688 = vmatpush.bf16.msra.mxu0 %v250
    %689 = vmatpush.bf16.msra.mxu0 %v248
    %690 = vmatmul.bf16.gmra.mxu0 %v680
    %v691 = vpop.f32.mrf.mxu0
    %v692 = vadd.f32 0.0, %v691
    %v693 = vpop.f32.mrf.mxu0
    %694 = vdwg.mxu0
    %695 = vmatpush.bf16.msra.mxu0 0
    %696 = vmatpush.bf16.msra.mxu0 0
    %697 = vmatpush.bf16.msra.mxu0 0
    %698 = vmatpush.bf16.msra.mxu0 0
    %699 = vmatpush.bf16.msra.mxu0 %v255
    %700 = vmatpush.bf16.msra.mxu0 %v253
    %701 = vmatpush.bf16.msra.mxu0 %v251
    %702 = vmatpush.bf16.msra.mxu0 %v249
    %703 = vmatmul.bf16.gmra.mxu0 %v680
    %v704 = vpop.f32.mrf.mxu0
    %v705 = vadd.f32 0.0, %v704
    %v706 = vpop.f32.mrf.mxu0
    %707 = vdwg.mxu0
    %v708 = vadd.f32 %v672, %v692
    %v709 = vxor.u32 %v708, 2147483648
    %v710 = vmul.f32 %v709, 1.442695
    %v711 = vpow.pop %v710
    %v712 = vadd.f32 %v711, 1.0
    %v713 = vrcp.pop %v712
    %v714 = vmul.f32 %v712, %v713
    %v715 = vsub.f32 1.0, %v714
    %v716 = vmul.f32 %v713, %v715
    %v717 = vadd.f32 %v713, %v716
    %vm718 = vweird.f32 %v712
    %vm719 = vweird.f32 %v713
    %vm720 = vmor %vm718, %vm719
    %v721 = vsel %vm720, %v713, %v717
    %v722 = vand.u32 2147483647, %v712
    %vm723 = vcmp.eq.f32.partialorder %v722, 8.507059e+37
    %v724 = vand.u32 %v712, 2147483648
    %v725 = vor.u32 1.1754944e-38, %v724
    %v726 = vsel %vm723, %v725, %v721
    %v727 = vmul.f32 1.0, %v726
    %v728 = vadd.f32 %v705, %v314
    %v729 = vmul.f32 %v727, %v728
    %v730 = vadd.f32 %v673, %v729
    %v731 = vtanh.pop %v730
    %v732 = vsub.f32 1.0, %v727
    %734 = vrot.lane.b32.xlu0 %v731, 64
    %v735 = vpop.permute.xlu0 %734
    %v737 = vmul.f32 %v732, %v735
    %v739 = vrot.slane %v643, 6
    %v741 = vmul.f32 %v727, %v739
    %v742 = vadd.f32 %v737, %v741
    %v743 = vpack.c.bf16 %v742, %v742
    %745 = vrot.lane.b32.xlu0 %v743, 64
    %v746 = vpop.permute.xlu0 %745
    %748 = vst.msk [vmem:[#allocation4 + $0x4] sm:$0x1] %vm333, %v746
    %v749 = vmul.f32 %v742, %v338
    %751 = vrot.lane.b32.xlu0 %v749, 64
    %v752 = vpop.permute.xlu0 %751
    %v754 = vsel %vm345, %v752, 0.0
    %755 = vadd.xlane.f32.xlu0 %v754
    %v756 = vpop.xlane.xlu0 %755
    %v757 = vadd.f32 %v756, %v350
    %v758 = vmul.f32 %v757, 1.442695
    %v759 = vpow.pop %v758
    %v760 = vld [vmem:[%s1 + $0x8] sm:$0x3]
    %v761 = vmul.f32 %v759, %v760
    %v762 = vadd.f32 %v671, %v761
    %v763 = vld [vmem:[#allocation3 + $0x10] sm:$0xc]
    %v764 = vld [vmem:[#allocation3 + $0x18] sm:$0xc]
    %v765 = vunpack.c.l.b16 %v743
    %v766 = vpack.c.b16 %v765, %v765
    %767 = vrot.lane.b32.xlu0 %v766, 64
    %v768 = vpop.permute.xlu0 %767
    %v770 = vsel %vm207, %v768, 0
    %772 = vmatpush.bf16.msra.mxu0 0
    %773 = vmatpush.bf16.msra.mxu0 0
    %774 = vmatpush.bf16.msra.mxu0 0
    %775 = vmatpush.bf16.msra.mxu0 0
    %776 = vmatpush.bf16.msra.mxu0 %v254
    %777 = vmatpush.bf16.msra.mxu0 %v252
    %778 = vmatpush.bf16.msra.mxu0 %v250
    %779 = vmatpush.bf16.msra.mxu0 %v248
    %780 = vmatmul.bf16.gmra.mxu0 %v770
    %v781 = vpop.f32.mrf.mxu0
    %v782 = vadd.f32 0.0, %v781
    %v783 = vpop.f32.mrf.mxu0
    %784 = vdwg.mxu0
    %785 = vmatpush.bf16.msra.mxu0 0
    %786 = vmatpush.bf16.msra.mxu0 0
    %787 = vmatpush.bf16.msra.mxu0 0
    %788 = vmatpush.bf16.msra.mxu0 0
    %789 = vmatpush.bf16.msra.mxu0 %v255
    %790 = vmatpush.bf16.msra.mxu0 %v253
    %791 = vmatpush.bf16.msra.mxu0 %v251
    %792 = vmatpush.bf16.msra.mxu0 %v249
    %793 = vmatmul.bf16.gmra.mxu0 %v770
    %v794 = vpop.f32.mrf.mxu0
    %v795 = vadd.f32 0.0, %v794
    %v796 = vpop.f32.mrf.mxu0
    %797 = vdwg.mxu0
    %v799 = vrot.slane %v782, 6
    %v801 = vadd.f32 %v763, %v799
    %v802 = vxor.u32 %v801, 2147483648
    %v803 = vmul.f32 %v802, 1.442695
    %v804 = vpow.pop %v803
    %v805 = vadd.f32 %v804, 1.0
    %v806 = vrcp.pop %v805
    %v807 = vmul.f32 %v805, %v806
    %v808 = vsub.f32 1.0, %v807
    %v809 = vmul.f32 %v806, %v808
    %v810 = vadd.f32 %v806, %v809
    %vm811 = vweird.f32 %v805
    %vm812 = vweird.f32 %v806
    %vm813 = vmor %vm811, %vm812
    %v814 = vsel %vm813, %v806, %v810
    %v815 = vand.u32 2147483647, %v805
    %vm816 = vcmp.eq.f32.partialorder %v815, 8.507059e+37
    %v817 = vand.u32 %v805, 2147483648
    %v818 = vor.u32 1.1754944e-38, %v817
    %v819 = vsel %vm816, %v818, %v814
    %v820 = vmul.f32 1.0, %v819
    %v821 = vadd.f32 %v795, %v314
    %v823 = vrot.slane %v821, 6
    %v825 = vmul.f32 %v820, %v823
    %v826 = vadd.f32 %v764, %v825
    %v827 = vtanh.pop %v826
    %v828 = vsub.f32 1.0, %v820
    %830 = vrot.lane.b32.xlu0 %v827, 64
    %v831 = vpop.permute.xlu0 %830
    %v833 = vmul.f32 %v828, %v831
    %v835 = vrot.slane %v742, 6
    %v837 = vmul.f32 %v820, %v835
    %v838 = vadd.f32 %v833, %v837
    %v839 = vpack.c.bf16 %v838, %v838
    %841 = vrot.lane.b32.xlu0 %v839, 64
    %v842 = vpop.permute.xlu0 %841
    %844 = vst.msk [vmem:[#allocation4 + $0x4] sm:$0x2] %vm439, %v842
    %v845 = vmul.f32 %v838, %v338
    %847 = vrot.lane.b32.xlu0 %v845, 64
    %v848 = vpop.permute.xlu0 %847
    %v850 = vsel %vm446, %v848, 0.0
    %851 = vadd.xlane.f32.xlu0 %v850
    %v852 = vpop.xlane.xlu0 %851
    %v853 = vadd.f32 %v852, %v350
    %v854 = vmul.f32 %v853, 1.442695
    %v855 = vpow.pop %v854
    %v856 = vld [vmem:[%s1 + $0xa] sm:$0x3]
    %v858 = vrot.slane %v856, 6
    %v860 = vmul.f32 %v855, %v858
    %v862 = vrot.slane %v860, 2
    %v864 = vadd.f32 %v762, %v862
    %v865 = vld [vmem:[#allocation3 + $0x10] sm:$0x30]
    %v866 = vld [vmem:[#allocation3 + $0x18] sm:$0x30]
    %v867 = vunpack.c.l.b16 %v839
    %v868 = vpack.c.b16 %v867, %v867
    %v869 = vrot.slane %v868, 1
    %870 = vrot.lane.b32.xlu0 %v869, 64
    %v871 = vpop.permute.xlu0 %870
    %v873 = vsel %vm207, %v871, 0
    %875 = vmatpush.bf16.msra.mxu0 0
    %876 = vmatpush.bf16.msra.mxu0 0
    %877 = vmatpush.bf16.msra.mxu0 0
    %878 = vmatpush.bf16.msra.mxu0 0
    %879 = vmatpush.bf16.msra.mxu0 %v254
    %880 = vmatpush.bf16.msra.mxu0 %v252
    %881 = vmatpush.bf16.msra.mxu0 %v250
    %882 = vmatpush.bf16.msra.mxu0 %v248
    %883 = vmatmul.bf16.gmra.mxu0 %v873
    %v884 = vpop.f32.mrf.mxu0
    %v885 = vadd.f32 0.0, %v884
    %v886 = vpop.f32.mrf.mxu0
    %887 = vdwg.mxu0
    %888 = vmatpush.bf16.msra.mxu0 0
    %889 = vmatpush.bf16.msra.mxu0 0
    %890 = vmatpush.bf16.msra.mxu0 0
    %891 = vmatpush.bf16.msra.mxu0 0
    %892 = vmatpush.bf16.msra.mxu0 %v255
    %893 = vmatpush.bf16.msra.mxu0 %v253
    %894 = vmatpush.bf16.msra.mxu0 %v251
    %895 = vmatpush.bf16.msra.mxu0 %v249
    %896 = vmatmul.bf16.gmra.mxu0 %v873
    %v897 = vpop.f32.mrf.mxu0
    %v898 = vadd.f32 0.0, %v897
    %v899 = vpop.f32.mrf.mxu0
    %900 = vdwg.mxu0
    %v902 = vrot.slane %v885, 4
    %v904 = vadd.f32 %v865, %v902
    %v905 = vxor.u32 %v904, 2147483648
    %v906 = vmul.f32 %v905, 1.442695
    %v907 = vpow.pop %v906
    %v908 = vadd.f32 %v907, 1.0
    %v909 = vrcp.pop %v908
    %v910 = vmul.f32 %v908, %v909
    %v911 = vsub.f32 1.0, %v910
    %v912 = vmul.f32 %v909, %v911
    %v913 = vadd.f32 %v909, %v912
    %vm914 = vweird.f32 %v908
    %vm915 = vweird.f32 %v909
    %vm916 = vmor %vm914, %vm915
    %v917 = vsel %vm916, %v909, %v913
    %v918 = vand.u32 2147483647, %v908
    %vm919 = vcmp.eq.f32.partialorder %v918, 8.507059e+37
    %v920 = vand.u32 %v908, 2147483648
    %v921 = vor.u32 1.1754944e-38, %v920
    %v922 = vsel %vm919, %v921, %v917
    %v923 = vmul.f32 1.0, %v922
    %v924 = vadd.f32 %v898, %v314
    %v926 = vrot.slane %v924, 4
    %v928 = vmul.f32 %v923, %v926
    %v929 = vadd.f32 %v866, %v928
    %v930 = vtanh.pop %v929
    %v931 = vsub.f32 1.0, %v923
    %933 = vrot.lane.b32.xlu0 %v930, 64
    %v934 = vpop.permute.xlu0 %933
    %v936 = vmul.f32 %v931, %v934
    %v938 = vrot.slane %v838, 6
    %v940 = vmul.f32 %v923, %v938
    %v941 = vadd.f32 %v936, %v940
    %v942 = vpack.c.bf16 %v941, %v941
    %944 = vrot.lane.b32.xlu0 %v942, 64
    %v945 = vpop.permute.xlu0 %944
    %947 = vst.msk [vmem:[#allocation4 + $0x4] sm:$0x4] %vm544, %v945
    %v948 = vmul.f32 %v941, %v338
    %950 = vrot.lane.b32.xlu0 %v948, 64
    %v951 = vpop.permute.xlu0 %950
    %v953 = vsel %vm551, %v951, 0.0
    %954 = vadd.xlane.f32.xlu0 %v953
    %v955 = vpop.xlane.xlu0 %954
    %v956 = vadd.f32 %v955, %v350
    %v957 = vmul.f32 %v956, 1.442695
    %v958 = vpow.pop %v957
    %v959 = vld [vmem:[%s1 + $0xc] sm:$0x3]
    %v961 = vrot.slane %v959, 4
    %v963 = vmul.f32 %v958, %v961
    %v965 = vrot.slane %v963, 4
    %v967 = vadd.f32 %v864, %v965
    %v968 = vld [vmem:[#allocation3 + $0x10] sm:$0xc0]
    %v969 = vld [vmem:[#allocation3 + $0x18] sm:$0xc0]
    %v970 = vunpack.c.l.b16 %v942
    %v971 = vpack.c.b16 %v970, %v970
    %v972 = vrot.slane %v971, 2
    %973 = vrot.lane.b32.xlu0 %v972, 64
    %v974 = vpop.permute.xlu0 %973
    %v976 = vsel %vm207, %v974, 0
    %978 = vmatpush.bf16.msra.mxu0 0
    %979 = vmatpush.bf16.msra.mxu0 0
    %980 = vmatpush.bf16.msra.mxu0 0
    %981 = vmatpush.bf16.msra.mxu0 0
    %982 = vmatpush.bf16.msra.mxu0 %v254
    %983 = vmatpush.bf16.msra.mxu0 %v252
    %984 = vmatpush.bf16.msra.mxu0 %v250
    %985 = vmatpush.bf16.msra.mxu0 %v248
    %986 = vmatmul.bf16.gmra.mxu0 %v976
    %v987 = vpop.f32.mrf.mxu0
    %v988 = vadd.f32 0.0, %v987
    %v989 = vpop.f32.mrf.mxu0
    %990 = vdwg.mxu0
    %991 = vmatpush.bf16.msra.mxu0 0
    %992 = vmatpush.bf16.msra.mxu0 0
    %993 = vmatpush.bf16.msra.mxu0 0
    %994 = vmatpush.bf16.msra.mxu0 0
    %995 = vmatpush.bf16.msra.mxu0 %v255
    %996 = vmatpush.bf16.msra.mxu0 %v253
    %997 = vmatpush.bf16.msra.mxu0 %v251
    %998 = vmatpush.bf16.msra.mxu0 %v249
    %999 = vmatmul.bf16.gmra.mxu0 %v976
    %v1000 = vpop.f32.mrf.mxu0
    %v1001 = vadd.f32 0.0, %v1000
    %v1002 = vpop.f32.mrf.mxu0
    %1003 = vdwg.mxu0
    %v1005 = vrot.slane %v988, 2
    %v1007 = vadd.f32 %v968, %v1005
    %v1008 = vxor.u32 %v1007, 2147483648
    %v1009 = vmul.f32 %v1008, 1.442695
    %v1010 = vpow.pop %v1009
    %v1011 = vadd.f32 %v1010, 1.0
    %v1012 = vrcp.pop %v1011
    %v1013 = vmul.f32 %v1011, %v1012
    %v1014 = vsub.f32 1.0, %v1013
    %v1015 = vmul.f32 %v1012, %v1014
    %v1016 = vadd.f32 %v1012, %v1015
    %vm1017 = vweird.f32 %v1011
    %vm1018 = vweird.f32 %v1012
    %vm1019 = vmor %vm1017, %vm1018
    %v1020 = vsel %vm1019, %v1012, %v1016
    %v1021 = vand.u32 2147483647, %v1011
    %vm1022 = vcmp.eq.f32.partialorder %v1021, 8.507059e+37
    %v1023 = vand.u32 %v1011, 2147483648
    %v1024 = vor.u32 1.1754944e-38, %v1023
    %v1025 = vsel %vm1022, %v1024, %v1020
    %v1026 = vmul.f32 1.0, %v1025
    %v1027 = vadd.f32 %v1001, %v314
    %v1029 = vrot.slane %v1027, 2
    %v1031 = vmul.f32 %v1026, %v1029
    %v1032 = vadd.f32 %v969, %v1031
    %v1033 = vtanh.pop %v1032
    %v1034 = vsub.f32 1.0, %v1026
    %1036 = vrot.lane.b32.xlu0 %v1033, 64
    %v1037 = vpop.permute.xlu0 %1036
    %v1039 = vmul.f32 %v1034, %v1037
    %v1041 = vrot.slane %v941, 6
    %v1043 = vmul.f32 %v1026, %v1041
    %v1044 = vadd.f32 %v1039, %v1043
    %v1045 = vpack.c.bf16 %v1044, %v1044
    %1047 = vrot.lane.b32.xlu0 %v1045, 64
    %v1048 = vpop.permute.xlu0 %1047
    %1050 = vst.msk [vmem:[#allocation4 + $0x4] sm:$0x8] %vm649, %v1048
    %v1051 = vmul.f32 %v1044, %v338
    %1053 = vrot.lane.b32.xlu0 %v1051, 64
    %v1054 = vpop.permute.xlu0 %1053
    %v1056 = vsel %vm656, %v1054, 0.0
    %1057 = vadd.xlane.f32.xlu0 %v1056
    %v1058 = vpop.xlane.xlu0 %1057
    %v1059 = vadd.f32 %v1058, %v350
    %v1060 = vmul.f32 %v1059, 1.442695
    %v1061 = vpow.pop %v1060
    %v1062 = vld [vmem:[%s1 + $0xe] sm:$0x3]
    %v1064 = vrot.slane %v1062, 2
    %v1066 = vmul.f32 %v1061, %v1064
    %v1068 = vrot.slane %v1066, 6
    %v1070 = vadd.f32 %v967, %v1068
    %v1071 = vmax.f32 %v1070, 1e-06
    %v1072 = vrcp.pop %v1071
    %1073 = vrot.lane.b32.xlu0 %v459, 1
    %v1074 = vpop.permute.xlu0 %1073
    %1076 = vrot.lane.b32.xlu0 %v564, 2
    %v1077 = vpop.permute.xlu0 %1076
    %1079 = vrot.lane.b32.xlu0 %v669, 3
    %v1080 = vpop.permute.xlu0 %1079
    %1083 = vrot.lane.b32.xlu0 %v761, 4
    %v1084 = vpop.permute.xlu0 %1083
    %1086 = vrot.lane.b32.xlu0 %v862, 5
    %v1087 = vpop.permute.xlu0 %1086
    %1089 = vrot.lane.b32.xlu0 %v965, 6
    %v1090 = vpop.permute.xlu0 %1089
    %1092 = vrot.lane.b32.xlu0 %v1068, 7
    %v1093 = vpop.permute.xlu0 %1092
    %vm1095 = vcmask 7168
    %v1096 = vsel %vm1095, %v356, %v1074
    %vm1097 = vcmask 15360
    %v1098 = vsel %vm1097, %v1096, %v1077
    %vm1099 = vcmask 23552
    %v1100 = vsel %vm1099, %v1098, %v1080
    %vm1101 = vcmask 31744
    %v1102 = vsel %vm1101, %v1100, %v1084
    %vm1103 = vcmask 39936
    %v1104 = vsel %vm1103, %v1102, %v1087
    %vm1105 = vcmask 48128
    %v1106 = vsel %vm1105, %v1104, %v1090
    %vm1107 = vcmask 56320
    %v1108 = vsel %vm1107, %v1106, %v1093
    %1110 = vset.pattern.permute.xlu0 0
    %1111 = vperm.xlu0 %1110, %v1072
    %v1112 = vpop.permute.xlu0 %1111
    %v1114 = vmul.f32 %v1108, %v1112
    %vm1115 = vcmask 58368
    %1116 = vst.msk [vmem:[#allocation14] sm:$0x3] %vm1115, %v1114
    %v1117 = vld [vmem:[#allocation4] sm:$0xf]
    %v1118 = vld [vmem:[#allocation4 + $0x4] sm:$0xf]
    %v1119 = vld [vmem:[%s9] sm:$0xf]
    %v1120 = vld [vmem:[%s9 + $0x4] sm:$0xf]
    %v1121 = vld [vmem:[%s9 + $0x8] sm:$0xf]
    %v1122 = vld [vmem:[%s9 + $0xc] sm:$0xf]
    %v1123 = vld [vmem:[%s9 + $0x10] sm:$0xf]
    %v1124 = vld [vmem:[%s9 + $0x14] sm:$0xf]
    %v1125 = vld [vmem:[%s9 + $0x18] sm:$0xf]
    %v1126 = vld [vmem:[%s9 + $0x1c] sm:$0xf]
    %v1127 = vld [vmem:[%s10] sm:$0x1]
    %v1129 = vperm.slane %v1127, 0
    %v1133 = vunpack.c.l.b16 %v1117
    %v1134 = vunpack.c.l.b16 %v1118
    %v1135 = vpack.c.b16 %v1134, %v1133
    %v1144 = vunpack.c.l.b16 %v1119
    %v1145 = vunpack.c.l.b16 %v1120
    %v1146 = vunpack.c.l.b16 %v1121
    %v1147 = vunpack.c.l.b16 %v1122
    %v1148 = vunpack.c.l.b16 %v1123
    %v1149 = vunpack.c.l.b16 %v1124
    %v1150 = vunpack.c.l.b16 %v1125
    %v1151 = vunpack.c.l.b16 %v1126
    %v1152 = vpack.c.b16 %v1145, %v1144
    %v1153 = vpack.c.b16 %v1147, %v1146
    %v1154 = vpack.c.b16 %v1149, %v1148
    %v1155 = vpack.c.b16 %v1151, %v1150
    %v1161 = vsel %vm207, %v1135, 0
    %1163 = vmatpush.bf16.msra.mxu0 0
    %1164 = vmatpush.bf16.msra.mxu0 0
    %1165 = vmatpush.bf16.msra.mxu0 0
    %1166 = vmatpush.bf16.msra.mxu0 0
    %1167 = vmatpush.bf16.msra.mxu0 %v1155
    %1168 = vmatpush.bf16.msra.mxu0 %v1154
    %1169 = vmatpush.bf16.msra.mxu0 %v1153
    %1170 = vmatpush.bf16.msra.mxu0 %v1152
    %1171 = vmatmul.bf16.gmra.mxu0 %v1161
    %v1172 = vpop.f32.mrf.mxu0
    %v1173 = vadd.f32 %v1129, %v1172
    %v1174 = vpop.f32.mrf.mxu0
    %v1175 = vadd.f32 %v1129, %v1174
    %1176 = vdwg.mxu0
    %1177 = vst.msk [vmem:[#allocation5] sm:$0xff] %vm174, %v1173
    %1178 = vst.msk [vmem:[#allocation5 + $0x8] sm:$0xff] %vm174, %v1175
    %v1179 = vld [vmem:[#allocation5] sm:$0xff]
    %v1180 = vld [vmem:[#allocation5 + $0x8] sm:$0xff]
    %v1181 = vld [vmem:[%s1] sm:$0xff]
    %v1182 = vld [vmem:[%s1 + $0x8] sm:$0xff]
    %1184 = vset.pattern.permute.xlu0 0
    %1185 = vperm.xlu0 %1184, %v1181
    %v1186 = vpop.permute.xlu0 %1185
    %1189 = vset.pattern.permute.xlu0 0
    %1190 = vperm.xlu0 %1189, %v1182
    %v1191 = vpop.permute.xlu0 %1190
    %v1193 = vmul.f32 %v1179, %v1186
    %v1194 = vmul.f32 %v1180, %v1191
    %v1195 = vtanh.pop %v1193
    %v1196 = vtanh.pop %v1194
    %1197 = vst.msk [vmem:[#allocation15] sm:$0xff] %vm174, %v1195
    %1198 = vst.msk [vmem:[#allocation15 + $0x8] sm:$0xff] %vm174, %v1196
    %v1199 = vmul.f32 %v356, %v1072
    %v1200 = vld [vmem:[#allocation15] sm:$0x3]
    %v1201 = vld [vmem:[#allocation2] sm:$0x1]
    %v1202 = vunpack.c.l.bf16 %v1201
    %1204 = vset.pattern.permute.xlu0 0
    %1205 = vperm.xlu0 %1204, %v1199
    %v1206 = vpop.permute.xlu0 %1205
    %v1208 = vmul.f32 %v1206, %v1200
    %v1209 = vmul.f32 %v1208, %v1202
    %v1210 = vadd.f32 %v1209, 0.0
    %v1211 = vrot.slane %v1072, 6
    %v1213 = vmul.f32 %v457, %v1211
    %v1214 = vld [vmem:[#allocation15 + $0x2] sm:$0x3]
    %v1215 = vld [vmem:[#allocation2] sm:$0x2]
    %v1216 = vunpack.c.l.bf16 %v1215
    %1218 = vset.pattern.permute.xlu0 0
    %1219 = vperm.xlu0 %1218, %v1213
    %v1220 = vpop.permute.xlu0 %1219
    %v1223 = vrot.slane %v1214, 6
    %v1225 = vmul.f32 %v1220, %v1223
    %v1226 = vmul.f32 %v1225, %v1216
    %v1228 = vrot.slane %v1226, 2
    %v1230 = vadd.f32 %v1210, %v1228
    %v1231 = vrot.slane %v1072, 4
    %v1233 = vmul.f32 %v562, %v1231
    %v1234 = vld [vmem:[#allocation15 + $0x4] sm:$0x3]
    %v1235 = vld [vmem:[#allocation2] sm:$0x4]
    %v1236 = vunpack.c.l.bf16 %v1235
    %1238 = vset.pattern.permute.xlu0 0
    %1239 = vperm.xlu0 %1238, %v1233
    %v1240 = vpop.permute.xlu0 %1239
    %v1243 = vrot.slane %v1234, 4
    %v1245 = vmul.f32 %v1240, %v1243
    %v1246 = vmul.f32 %v1245, %v1236
    %v1248 = vrot.slane %v1246, 4
    %v1250 = vadd.f32 %v1230, %v1248
    %v1251 = vrot.slane %v1072, 2
    %v1253 = vmul.f32 %v667, %v1251
    %v1254 = vld [vmem:[#allocation15 + $0x6] sm:$0x3]
    %v1255 = vld [vmem:[#allocation2] sm:$0x8]
    %v1256 = vunpack.c.l.bf16 %v1255
    %1258 = vset.pattern.permute.xlu0 0
    %1259 = vperm.xlu0 %1258, %v1253
    %v1260 = vpop.permute.xlu0 %1259
    %v1263 = vrot.slane %v1254, 2
    %v1265 = vmul.f32 %v1260, %v1263
    %v1266 = vmul.f32 %v1265, %v1256
    %v1268 = vrot.slane %v1266, 6
    %v1270 = vadd.f32 %v1250, %v1268
    %v1271 = vmul.f32 %v761, %v1072
    %v1272 = vld [vmem:[#allocation15 + $0x8] sm:$0x3]
    %v1273 = vld [vmem:[#allocation2 + $0x4] sm:$0x1]
    %v1274 = vunpack.c.l.bf16 %v1273
    %1276 = vset.pattern.permute.xlu0 0
    %1277 = vperm.xlu0 %1276, %v1271
    %v1278 = vpop.permute.xlu0 %1277
    %v1280 = vmul.f32 %v1278, %v1272
    %v1281 = vmul.f32 %v1280, %v1274
    %v1282 = vadd.f32 %v1270, %v1281
    %v1283 = vmul.f32 %v860, %v1211
    %v1284 = vld [vmem:[#allocation15 + $0xa] sm:$0x3]
    %v1285 = vld [vmem:[#allocation2 + $0x4] sm:$0x2]
    %v1286 = vunpack.c.l.bf16 %v1285
    %1288 = vset.pattern.permute.xlu0 0
    %1289 = vperm.xlu0 %1288, %v1283
    %v1290 = vpop.permute.xlu0 %1289
    %v1293 = vrot.slane %v1284, 6
    %v1295 = vmul.f32 %v1290, %v1293
    %v1296 = vmul.f32 %v1295, %v1286
    %v1298 = vrot.slane %v1296, 2
    %v1300 = vadd.f32 %v1282, %v1298
    %v1301 = vmul.f32 %v963, %v1231
    %v1302 = vld [vmem:[#allocation15 + $0xc] sm:$0x3]
    %v1303 = vld [vmem:[#allocation2 + $0x4] sm:$0x4]
    %v1304 = vunpack.c.l.bf16 %v1303
    %1306 = vset.pattern.permute.xlu0 0
    %1307 = vperm.xlu0 %1306, %v1301
    %v1308 = vpop.permute.xlu0 %1307
    %v1311 = vrot.slane %v1302, 4
    %v1313 = vmul.f32 %v1308, %v1311
    %v1314 = vmul.f32 %v1313, %v1304
    %v1316 = vrot.slane %v1314, 4
    %v1318 = vadd.f32 %v1300, %v1316
    %v1319 = vmul.f32 %v1066, %v1251
    %v1320 = vld [vmem:[#allocation15 + $0xe] sm:$0x3]
    %v1321 = vld [vmem:[#allocation2 + $0x4] sm:$0x8]
    %v1322 = vunpack.c.l.bf16 %v1321
    %1324 = vset.pattern.permute.xlu0 0
    %1325 = vperm.xlu0 %1324, %v1319
    %v1326 = vpop.permute.xlu0 %1325
    %v1329 = vrot.slane %v1320, 2
    %v1331 = vmul.f32 %v1326, %v1329
    %v1332 = vmul.f32 %v1331, %v1322
    %v1334 = vrot.slane %v1332, 6
    %v1336 = vadd.f32 %v1318, %v1334
    %v1337 = vpack.c.bf16 %v1336, %v1336
    %v1338 = vld [vmem:[%s11] sm:$0xf]
    %v1339 = vld [vmem:[%s11 + $0x4] sm:$0xf]
    %v1340 = vld [vmem:[%s11 + $0x8] sm:$0xf]
    %v1341 = vld [vmem:[%s11 + $0xc] sm:$0xf]
    %v1342 = vld [vmem:[#allocation7] sm:$0x1]
    %v1344 = vperm.slane %v1342, 0
    %v1350 = vunpack.c.l.b16 %v1338
    %v1351 = vunpack.c.l.b16 %v1339
    %v1352 = vunpack.c.l.b16 %v1340
    %v1353 = vunpack.c.l.b16 %v1341
    %v1354 = vpack.c.b16 %v1351, %v1350
    %v1355 = vpack.c.b16 %v1353, %v1352
    %v1359 = vsel %vm174, %v1337, 0
    %1361 = vmatpush.bf16.msra.mxu0 0
    %1362 = vmatpush.bf16.msra.mxu0 0
    %1363 = vmatpush.bf16.msra.mxu0 0
    %1364 = vmatpush.bf16.msra.mxu0 0
    %1365 = vmatpush.bf16.msra.mxu0 0
    %1366 = vmatpush.bf16.msra.mxu0 0
    %1367 = vmatpush.bf16.msra.mxu0 %v1355
    %1368 = vmatpush.bf16.msra.mxu0 %v1354
    %1369 = vmatmul.bf16.gmra.mxu0 %v1359
    %v1370 = vpop.f32.mrf.mxu0
    %v1371 = vadd.f32 %v1344, %v1370
    %v1372 = vpop.f32.mrf.mxu0
    %1373 = vdwg.mxu0
    %vm1374 = vcmask 1024
    %1375 = vst.msk [vmem:[%s13] sm:$0x3] %vm1374, %v1371
    // Predicated region
    $region66: #{tpu_custom_call.1} parent=1 // pred_check
      _
    $region67: #{tpu_custom_call.1} parent=1 // pred_check_branch
      %1377 = sbr.rel (0) target = $region69
    $region68: #{tpu_custom_call.1} parent=1 // pred_region
      _
    $region69: #{tpu_custom_call.1} parent=1 // pred_fallthru
      _
    // Predicated region
    $region70: #{tpu_custom_call.1} parent=1 // pred_check
      _
    $region71: #{tpu_custom_call.1} parent=1 // pred_check_branch
      %1379 = sbr.rel (0) target = $region73
    $region72: #{tpu_custom_call.1} parent=1 // pred_region
      %1381 = vsyncadd [#allocation10], 0
      %s1383 = sshll.u32 [#allocation14], 4
      %s1384 = int_to_ptr.vmem [resolvable:$true] %s1383
      %s1385 = sshll.u32 %s14, 4
      %s1386 = int_to_ptr.hbm [resolvable:$true] %s1385
      %1388 = dma.vmem_to_hbm [thread:$0]  %s1384, 32, %s1386, [#allocation10]
    $region73: #{tpu_custom_call.1} parent=1 // pred_fallthru
      _
    // Predicated region
    $region74: #{tpu_custom_call.1} parent=1 // pred_check
      _
    $region75: #{tpu_custom_call.1} parent=1 // pred_check_branch
      %1390 = sbr.rel (0) target = $region77
    $region76: #{tpu_custom_call.1} parent=1 // pred_region
      %1392 = vsyncadd [#allocation16], 0
      %s1393 = sshll.u32 [#allocation15], 4
      %s1394 = int_to_ptr.vmem [resolvable:$true] %s1393
      %s1395 = sshll.u32 %s15, 4
      %s1396 = int_to_ptr.hbm [resolvable:$true] %s1395
      %1401 = dma.vmem_to_hbm [thread:$0]  %s1394, 256, %s1396, [#allocation16], 128, 128, 8
    $region77: #{tpu_custom_call.1} parent=1 // pred_fallthru
      _
    // Predicated region
    $region78: #{tpu_custom_call.1} parent=1 // pred_check
      _
    $region79: #{tpu_custom_call.1} parent=1 // pred_check_branch
      %1403 = sbr.rel (0) target = $region81
    $region80: #{tpu_custom_call.1} parent=1 // pred_region
      _
    $region81: #{tpu_custom_call.1} parent=1 // pred_fallthru
      _
    // Predicated region
    $region82: #{tpu_custom_call.1} parent=1 // pred_check
      _
    $region83: #{tpu_custom_call.1} parent=1 // pred_check_branch
      %1405 = sbr.rel (0) target = $region85
    $region84: #{tpu_custom_call.1} parent=1 // pred_region
      %1407 = dma.done [#allocation10], 32
    $region85: #{tpu_custom_call.1} parent=1 // pred_fallthru
      _
    // Predicated region
    $region86: #{tpu_custom_call.1} parent=1 // pred_check
      _
    $region87: #{tpu_custom_call.1} parent=1 // pred_check_branch
      %1409 = sbr.rel (0) target = $region89
    $region88: #{tpu_custom_call.1} parent=1 // pred_region
      %1411 = dma.done [#allocation16], 256
    $region89: #{tpu_custom_call.1} parent=1 // pred_fallthru
      _
    %1412 = vsyncpa [#allocation9], 1
    %1413 = vsyncpa [#allocation12], 1
    %1414 = vsyncpa [#allocation10], 1
    %1415 = vsyncpa [#allocation16], 1

</llo_original>
